<compile_context>
chip_gen: v7x
topology: tpu7x:2x2x1
jax: 0.10.0
libtpu: 0.0.40
codegen_flags: <defaults>
</compile_context>

<pallas_src>
import functools

import jax
import jax.numpy as jnp
from jax.experimental import pallas as pl
from jax.experimental.pallas import tpu as pltpu


def _round_up(v, m):
    return ((v + m - 1) // m) * m


@functools.lru_cache(maxsize=None)
def _vmem_limit_bytes():
    """~75% of physical VMEM: ~48 MiB on v7x (64 MiB), ~96 MiB on v5e/v6e (128 MiB)."""
    try:
        cap = getattr(pltpu.get_tpu_info(), "vmem_capacity_bytes", None)
    except Exception:
        cap = None
    if not cap:
        cap = 64 * 1024 * 1024
    return int(max(32 * 1024 * 1024, min(cap * 3 // 4, 100 * 1024 * 1024)))


def _conv_bias_relu(x_a_ref, x_b_ref, w_ref, b_ref, *, K, dilation):
    """Dilated Conv1d + bias + ReLU on one lane tile; returns f32 (C_out, T).

    x_a_ref : (1, C_in, T)   main padded-input tile (MXU dtype)
    x_b_ref : (1, C_in, HB)  right-halo tile (next HB padded-input columns)
    w_ref   : (K, C_out, C_in)
    b_ref   : (C_out, 1) f32

    K accumulating MXU matmuls (one per tap) — no (K*C_in, T) im2col copy.  Only
    a T-wide shifted view is formed per tap for k >= 1.  (For tiny K*C_in a
    single fused im2col matmul would also work, but the accumulating form keeps
    VMEM flat for large C_in.)
    """
    x_a = x_a_ref[0]                                   # (C_in, T)
    d = dilation
    acc = jnp.dot(w_ref[0], x_a, preferred_element_type=jnp.float32)   # (C_out, T)
    for k in range(1, K):                              # static unroll over taps
        shifted = jnp.concatenate([x_a[:, k * d:], x_b_ref[0, :, :k * d]], axis=1)
        acc += jnp.dot(w_ref[k], shifted, preferred_element_type=jnp.float32)
    return jnp.maximum(acc + b_ref[...], 0.0)


def _stats_kernel(x_a_ref, x_b_ref, w_ref, b_ref, stats_ref, *,
                  K, dilation, tile, l_out, mask):
    """Pass 1: recomputable conv+bias+ReLU -> per-(n, l) channel sum / sumsq only."""
    y = _conv_bias_relu(x_a_ref, x_b_ref, w_ref, b_ref, K=K, dilation=dilation)
    if mask:  # static: only when the last L tile is partial
        col = jax.lax.broadcasted_iota(jnp.int32, (1, tile), 1)
        valid = (pl.program_id(1) * tile + col) < l_out
        y = jnp.where(valid, y, 0.0)
    # Single fused store of both statistics (sum | sumsq) per grid step.
    stats_ref[0, 0] = jnp.concatenate(
        [jnp.sum(y, axis=1, keepdims=True),
         jnp.sum(y * y, axis=1, keepdims=True)], axis=1)       # (C_out, 2)


def _apply_kernel(x_a_ref, x_b_ref, w_ref, b_ref, bn_ref, o_ref, *, K, dilation):
    """Pass 2: recompute conv+bias+ReLU and fuse BN apply: o = y*scale + shift."""
    y = _conv_bias_relu(x_a_ref, x_b_ref, w_ref, b_ref, K=K, dilation=dilation)
    o_ref[0] = y * bn_ref[:, 0:1] + bn_ref[:, 1:2]


@functools.partial(
    jax.jit, static_argnames=("dilation", "padding", "eps", "l_tile", "mxu_dtype"))
def tdnn_layer_forward(x, weight, bias, *, dilation=1, padding=0, eps=1e-5,
                       l_tile=2048, mxu_dtype=jnp.bfloat16):
    """x: (N, C_in, L) (PyTorch NCL); weight: (C_out, C_in, K); bias: (C_out,).

    Returns (N, C_out, L_out) f32, matching TdnnLayer.forward in training mode
    (biased batch statistics for the affine-free BatchNorm1d).
    """
    N, C_in, L = x.shape
    C_out, C_in_w, K = weight.shape
    assert C_in_w == C_in
    halo = dilation * (K - 1)
    L_out = L + 2 * padding - halo
    assert L_out > 0

    # --- L tiling -------------------------------------------------------------
    HB = _round_up(max(halo, 1), 128)            # lane-aligned right-halo block
    T = min(_round_up(l_tile, 128), _round_up(L_out, 128))
    T = _round_up(max(T, HB), HB)                # L tile, multiple of halo block
    num_l = pl.cdiv(L_out, T)
    Lx = num_l * T + HB                          # padded length: all blocks in-bounds

    # --- operands (NCL layout throughout; L stays on the 128-lane axis) --------
    # One fused pad+cast pass over x; bf16 halves all downstream x traffic and
    # VMEM blocks.  TODO(synk): fold the zero pad / cast into the pass-1/2 loads
    # to avoid this extra HBM round trip entirely.
    x_p = jnp.pad(x.astype(mxu_dtype),
                  ((0, 0), (0, 0), (padding, Lx - L - padding)))
    w_t = jnp.transpose(weight, (2, 0, 1)).astype(mxu_dtype)   # (K, C_out, C_in)
    b2 = bias.reshape(C_out, 1).astype(jnp.float32)

    vmem_lim = _vmem_limit_bytes()
    mask_tail = (num_l * T != L_out)

    x_main_spec = pl.BlockSpec((1, C_in, T), lambda n, l: (n, 0, l))
    # Right halo = the next HB padded-input columns (same array, blocked spec, so
    # both x streams stay auto-pipelined; overhead is HB/T of extra x traffic).
    # TODO(synk): consider pipeline_mode=pl.Buffered(3) on x_main_spec for v7x.
    x_halo_spec = pl.BlockSpec((1, C_in, HB), lambda n, l: (n, 0, (l + 1) * (T // HB)))
    w_spec = pl.BlockSpec((K, C_out, C_in), lambda n, l: (0, 0, 0))   # resident
    b_spec = pl.BlockSpec((C_out, 1), lambda n, l: (0, 0))            # resident

    # --- pass 1: streaming BN statistics only (y never written to HBM) ---------
    stats = pl.pallas_call(
        functools.partial(_stats_kernel, K=K, dilation=dilation, tile=T,
                          l_out=L_out, mask=mask_tail),
        out_shape=jax.ShapeDtypeStruct((N, num_l, C_out, 2), jnp.float32),
        grid=(N, num_l),
        in_specs=[x_main_spec, x_halo_spec, w_spec, b_spec],
        out_specs=pl.BlockSpec((1, 1, C_out, 2), lambda n, l: (n, l, 0, 0)),
        compiler_params=pltpu.CompilerParams(
            dimension_semantics=("parallel", "parallel"),
            vmem_limit_bytes=vmem_lim),
    )(x_p, x_p, w_t, b2)

    # --- tiny XLA reduction: batch stats -> fused scale/shift ------------------
    # TODO(synk): Welford/shifted accumulation would be safer for huge N*L_out.
    cnt = jnp.float32(N * L_out)
    tot = jnp.sum(stats, axis=(0, 1))                       # (C_out, 2)
    mean = tot[:, 0] / cnt
    var = jnp.maximum(tot[:, 1] / cnt - mean * mean, 0.0)   # biased (training-mode)
    scale = jax.lax.rsqrt(var + eps)
    bn = jnp.stack([scale, -mean * scale], axis=1)          # (C_out, 2): scale | shift

    # --- pass 2: recompute conv+bias+ReLU, fuse BN apply, write final output ---
    out = pl.pallas_call(
        functools.partial(_apply_kernel, K=K, dilation=dilation),
        out_shape=jax.ShapeDtypeStruct((N, C_out, L_out), jnp.float32),
        grid=(N, num_l),
        in_specs=[x_main_spec, x_halo_spec, w_spec, b_spec,
                  pl.BlockSpec((C_out, 2), lambda n, l: (0, 0))],
        out_specs=pl.BlockSpec((1, C_out, T), lambda n, l: (n, 0, l)),
        compiler_params=pltpu.CompilerParams(
            dimension_semantics=("parallel", "parallel"),
            vmem_limit_bytes=vmem_lim),
    )(x_p, x_p, w_t, b2, bn)
    return out


def _reference(x, weight, bias, *, dilation, padding, eps=1e-5):
    """Pure-JAX reference mirroring the PyTorch forward (training-mode BN)."""
    y = jax.lax.conv_general_dilated(
        x, weight, window_strides=(1,), padding=[(padding, padding)],
        rhs_dilation=(dilation,), dimension_numbers=("NCH", "OIH", "NCH"))
    y = jnp.maximum(y + bias[None, :, None], 0.0)
    mean = jnp.mean(y, axis=(0, 2), keepdims=True)
    var = jnp.mean((y - mean) ** 2, axis=(0, 2), keepdims=True)
    return (y - mean) / jnp.sqrt(var + eps)


if __name__ == "__main__":
    # Small shapes consistent with TdnnLayer(in_dim=16, out_dim=32, context_size=3,
    # dilation=2, padding=1); x is (batch, in_dim, L).
    N, in_dim, out_dim, L = 2, 16, 32, 32
    context_size, dilation, padding = 3, 2, 1

    key = jax.random.PRNGKey(0)
    k_w, k_b, k_x = jax.random.split(key, 3)

    # Deterministic Conv1d-style init: U(-1/sqrt(fan_in), 1/sqrt(fan_in))
    bound = 1.0 / (in_dim * context_size) ** 0.5
    weight = jax.random.uniform(k_w, (out_dim, in_dim, context_size),
                                jnp.float32, -bound, bound)
    bias = jax.random.uniform(k_b, (out_dim,), jnp.float32, -bound, bound)
    x = jax.random.normal(k_x, (N, in_dim, L), jnp.float32)

    ref = _reference(x, weight, bias, dilation=dilation, padding=padding)

    # Production path: bf16 MXU operands (f32 accumulation / BN math) -> loose tol.
    out_bf16 = jax.block_until_ready(
        tdnn_layer_forward(x, weight, bias, dilation=dilation, padding=padding))
    assert out_bf16.shape == ref.shape, (out_bf16.shape, ref.shape)
    err_bf16 = float(jnp.max(jnp.abs(out_bf16 - ref)))
    assert err_bf16 < 8e-2, f"bf16-MXU path mismatch vs reference: {err_bf16}"

    # Exact-dtype check: f32 MXU operands must match the f32 reference tightly.
    out_f32 = jax.block_until_ready(
        tdnn_layer_forward(x, weight, bias, dilation=dilation, padding=padding,
                           mxu_dtype=jnp.float32))
    err_f32 = float(jnp.max(jnp.abs(out_f32 - ref)))
    assert err_f32 < 1e-4, f"f32-MXU path mismatch vs reference: {err_f32}"

    print("KERNEL_OK")
</pallas_src>

<mosaic_0001>
module attributes {stable_mosaic.version = 11 : i64} {
  func.func @_stats_kernel(%arg0: i32, %arg1: i32, %arg2: memref<1x16x128xbf16, #tpu.memory_space<vmem>>, %arg3: memref<1x16x128xbf16, #tpu.memory_space<vmem>>, %arg4: memref<3x32x16xbf16, #tpu.memory_space<vmem>>, %arg5: memref<32x1xf32, #tpu.memory_space<vmem>>, %arg6: memref<1x1x32x2xf32, #tpu.memory_space<vmem>>) attributes {dimension_semantics = [#tpu.dimension_semantics<parallel>, #tpu.dimension_semantics<parallel>], iteration_bounds = array<i64: 2, 1>, scalar_prefetch = 0 : i64, scratch_operands = 0 : i64, tpu.core_type = #tpu.core_type<tc>, window_params = [{transform_indices = @transform_0, window_bounds = array<i64: 1, 16, 128>}, {transform_indices = @transform_1, window_bounds = array<i64: 1, 16, 128>}, {pipeline_mode = #tpu.pipeline_mode<synchronous>, transform_indices = @transform_2, window_bounds = array<i64: 3, 32, 16>}, {pipeline_mode = #tpu.pipeline_mode<synchronous>, transform_indices = @transform_3, window_bounds = array<i64: 32, 1>}, {transform_indices = @transform_4, window_bounds = array<i64: 1, 1, 32, 2>}]} {
    %c0 = arith.constant 0 : index
    %c0_0 = arith.constant 0 : index
    %c0_1 = arith.constant 0 : index
    %0 = vector.load %arg2[%c0, %c0_0, %c0_1] : memref<1x16x128xbf16, #tpu.memory_space<vmem>>, vector<1x16x128xbf16>
    %1 = vector.shape_cast %0 : vector<1x16x128xbf16> to vector<16x128xbf16>
    %c0_2 = arith.constant 0 : index
    %c0_3 = arith.constant 0 : index
    %c0_4 = arith.constant 0 : index
    %2 = vector.load %arg4[%c0_2, %c0_3, %c0_4] : memref<3x32x16xbf16, #tpu.memory_space<vmem>>, vector<1x32x16xbf16>
    %3 = vector.shape_cast %2 : vector<1x32x16xbf16> to vector<32x16xbf16>
    %cst = arith.constant dense<0.000000e+00> : vector<32x128xf32>
    %4 = tpu.matmul %3, %1, %cst {dimension_numbers = #tpu.dot_dimension_numbers<[1], [0], [0], [1], [0, 0, 1, 1], [], []>} : vector<32x16xbf16>, vector<16x128xbf16>, vector<32x128xf32> -> vector<32x128xf32>
    %5 = vector.extract_strided_slice %1 {offsets = [0, 2], sizes = [16, 126], strides = [1, 1]} : vector<16x128xbf16> to vector<16x126xbf16>
    %c0_5 = arith.constant 0 : index
    %c0_6 = arith.constant 0 : index
    %c0_7 = arith.constant 0 : index
    %6 = vector.load %arg3[%c0_5, %c0_6, %c0_7] : memref<1x16x128xbf16, #tpu.memory_space<vmem>>, vector<1x16x2xbf16>
    %7 = vector.shape_cast %6 : vector<1x16x2xbf16> to vector<16x2xbf16>
    %8 = tpu.concatenate %5, %7 in 1 : vector<16x126xbf16>, vector<16x2xbf16> -> vector<16x128xbf16>
    %c1 = arith.constant 1 : index
    %c0_8 = arith.constant 0 : index
    %c0_9 = arith.constant 0 : index
    %9 = vector.load %arg4[%c1, %c0_8, %c0_9] : memref<3x32x16xbf16, #tpu.memory_space<vmem>>, vector<1x32x16xbf16>
    %10 = vector.shape_cast %9 : vector<1x32x16xbf16> to vector<32x16xbf16>
    %cst_10 = arith.constant dense<0.000000e+00> : vector<32x128xf32>
    %11 = tpu.matmul %10, %8, %cst_10 {dimension_numbers = #tpu.dot_dimension_numbers<[1], [0], [0], [1], [0, 0, 1, 1], [], []>} : vector<32x16xbf16>, vector<16x128xbf16>, vector<32x128xf32> -> vector<32x128xf32>
    %12 = arith.addf %4, %11 : vector<32x128xf32>
    %13 = vector.extract_strided_slice %1 {offsets = [0, 4], sizes = [16, 124], strides = [1, 1]} : vector<16x128xbf16> to vector<16x124xbf16>
    %c0_11 = arith.constant 0 : index
    %c0_12 = arith.constant 0 : index
    %c0_13 = arith.constant 0 : index
    %14 = vector.load %arg3[%c0_11, %c0_12, %c0_13] : memref<1x16x128xbf16, #tpu.memory_space<vmem>>, vector<1x16x4xbf16>
    %15 = vector.shape_cast %14 : vector<1x16x4xbf16> to vector<16x4xbf16>
    %16 = tpu.concatenate %13, %15 in 1 : vector<16x124xbf16>, vector<16x4xbf16> -> vector<16x128xbf16>
    %c2 = arith.constant 2 : index
    %c0_14 = arith.constant 0 : index
    %c0_15 = arith.constant 0 : index
    %17 = vector.load %arg4[%c2, %c0_14, %c0_15] : memref<3x32x16xbf16, #tpu.memory_space<vmem>>, vector<1x32x16xbf16>
    %18 = vector.shape_cast %17 : vector<1x32x16xbf16> to vector<32x16xbf16>
    %cst_16 = arith.constant dense<0.000000e+00> : vector<32x128xf32>
    %19 = tpu.matmul %18, %16, %cst_16 {dimension_numbers = #tpu.dot_dimension_numbers<[1], [0], [0], [1], [0, 0, 1, 1], [], []>} : vector<32x16xbf16>, vector<16x128xbf16>, vector<32x128xf32> -> vector<32x128xf32>
    %20 = arith.addf %12, %19 : vector<32x128xf32>
    %c0_17 = arith.constant 0 : index
    %c0_18 = arith.constant 0 : index
    %21 = vector.load %arg5[%c0_17, %c0_18] : memref<32x1xf32, #tpu.memory_space<vmem>>, vector<32x1xf32>
    %22 = vector.broadcast %21 : vector<32x1xf32> to vector<32x128xf32>
    %23 = arith.addf %20, %22 : vector<32x128xf32>
    %cst_19 = arith.constant 0.000000e+00 : f32
    %24 = vector.broadcast %cst_19 : f32 to vector<32x128xf32>
    %25 = arith.maximumf %23, %24 : vector<32x128xf32>
    %26 = tpu.iota {dimensions = array<i32: 1>} : vector<1x128xi32>
    %c128_i32 = arith.constant 128 : i32
    %27 = arith.muli %arg1, %c128_i32 : i32
    %28 = vector.broadcast %27 : i32 to vector<1x128xi32>
    %29 = arith.addi %28, %26 : vector<1x128xi32>
    %c30_i32 = arith.constant 30 : i32
    %30 = vector.broadcast %c30_i32 : i32 to vector<1x128xi32>
    %31 = arith.cmpi slt, %29, %30 : vector<1x128xi32>
    %cst_20 = arith.constant 0.000000e+00 : f32
    %32 = vector.shape_cast %31 : vector<1x128xi1> to vector<1x128xi1>
    %33 = vector.broadcast %32 : vector<1x128xi1> to vector<32x128xi1>
    %34 = vector.broadcast %cst_20 : f32 to vector<32x128xf32>
    %35 = arith.select %33, %25, %34 : vector<32x128xi1>, vector<32x128xf32>
    %cst_21 = arith.constant dense<0.000000e+00> : vector<32xf32>
    %36 = vector.multi_reduction <add>, %35, %cst_21 [1] : vector<32x128xf32> to vector<32xf32>
    %37 = vector.shape_cast %36 : vector<32xf32> to vector<32x1xf32>
    %38 = arith.mulf %35, %35 : vector<32x128xf32>
    %cst_22 = arith.constant dense<0.000000e+00> : vector<32xf32>
    %39 = vector.multi_reduction <add>, %38, %cst_22 [1] : vector<32x128xf32> to vector<32xf32>
    %40 = vector.shape_cast %39 : vector<32xf32> to vector<32x1xf32>
    %41 = tpu.concatenate %37, %40 in 1 : vector<32x1xf32>, vector<32x1xf32> -> vector<32x2xf32>
    %c0_23 = arith.constant 0 : index
    %c0_24 = arith.constant 0 : index
    %c0_25 = arith.constant 0 : index
    %c0_26 = arith.constant 0 : index
    %42 = vector.load %arg6[%c0_23, %c0_24, %c0_25, %c0_26] : memref<1x1x32x2xf32, #tpu.memory_space<vmem>>, vector<1x1x32x2xf32>
    %43 = vector.shape_cast %42 : vector<1x1x32x2xf32> to vector<32x2xf32>
    %44 = vector.shape_cast %41 : vector<32x2xf32> to vector<1x1x32x2xf32>
    tpu.vector_store %arg6[%c0_23, %c0_24, %c0_25, %c0_26], %44 {strides = array<i32>} : memref<1x1x32x2xf32, #tpu.memory_space<vmem>>, vector<1x1x32x2xf32>,
    return
  }
  func.func @transform_0(%arg0: i32, %arg1: i32) -> (i32, i32, i32) {
    %c0_i32 = arith.constant 0 : i32
    %c0_i32_0 = arith.constant 0 : i32
    return %arg0, %c0_i32, %arg1 : i32, i32, i32
  }
  func.func @transform_1(%arg0: i32, %arg1: i32) -> (i32, i32, i32) {
    %c1_i32 = arith.constant 1 : i32
    %0 = arith.addi %arg1, %c1_i32 : i32
    %c1_i32_0 = arith.constant 1 : i32
    %1 = arith.muli %0, %c1_i32_0 : i32
    %c0_i32 = arith.constant 0 : i32
    %c0_i32_1 = arith.constant 0 : i32
    return %arg0, %c0_i32, %1 : i32, i32, i32
  }
  func.func @transform_2(%arg0: i32, %arg1: i32) -> (i32, i32, i32) {
    %c0_i32 = arith.constant 0 : i32
    %c0_i32_0 = arith.constant 0 : i32
    %c0_i32_1 = arith.constant 0 : i32
    %c0_i32_2 = arith.constant 0 : i32
    return %c0_i32, %c0_i32_0, %c0_i32_1 : i32, i32, i32
  }
  func.func @transform_3(%arg0: i32, %arg1: i32) -> (i32, i32) {
    %c0_i32 = arith.constant 0 : i32
    %c0_i32_0 = arith.constant 0 : i32
    %c0_i32_1 = arith.constant 0 : i32
    return %c0_i32, %c0_i32_0 : i32, i32
  }
  func.func @transform_4(%arg0: i32, %arg1: i32) -> (i32, i32, i32, i32) {
    %c0_i32 = arith.constant 0 : i32
    %c0_i32_0 = arith.constant 0 : i32
    %c0_i32_1 = arith.constant 0 : i32
    return %arg0, %arg1, %c0_i32, %c0_i32_0 : i32, i32, i32, i32
  }
}

module attributes {stable_mosaic.version = 11 : i64} {
  func.func @_apply_kernel(%arg0: i32, %arg1: i32, %arg2: memref<1x16x128xbf16, #tpu.memory_space<vmem>>, %arg3: memref<1x16x128xbf16, #tpu.memory_space<vmem>>, %arg4: memref<3x32x16xbf16, #tpu.memory_space<vmem>>, %arg5: memref<32x1xf32, #tpu.memory_space<vmem>>, %arg6: memref<32x2xf32, #tpu.memory_space<vmem>>, %arg7: memref<1x32x128xf32, #tpu.memory_space<vmem>>) attributes {dimension_semantics = [#tpu.dimension_semantics<parallel>, #tpu.dimension_semantics<parallel>], iteration_bounds = array<i64: 2, 1>, scalar_prefetch = 0 : i64, scratch_operands = 0 : i64, tpu.core_type = #tpu.core_type<tc>, window_params = [{transform_indices = @transform_0, window_bounds = array<i64: 1, 16, 128>}, {transform_indices = @transform_1, window_bounds = array<i64: 1, 16, 128>}, {pipeline_mode = #tpu.pipeline_mode<synchronous>, transform_indices = @transform_2, window_bounds = array<i64: 3, 32, 16>}, {pipeline_mode = #tpu.pipeline_mode<synchronous>, transform_indices = @transform_3, window_bounds = array<i64: 32, 1>}, {pipeline_mode = #tpu.pipeline_mode<synchronous>, transform_indices = @transform_4, window_bounds = array<i64: 32, 2>}, {transform_indices = @transform_5, window_bounds = array<i64: 1, 32, 128>}]} {
    %c0 = arith.constant 0 : index
    %c0_0 = arith.constant 0 : index
    %c0_1 = arith.constant 0 : index
    %0 = vector.load %arg2[%c0, %c0_0, %c0_1] : memref<1x16x128xbf16, #tpu.memory_space<vmem>>, vector<1x16x128xbf16>
    %1 = vector.shape_cast %0 : vector<1x16x128xbf16> to vector<16x128xbf16>
    %c0_2 = arith.constant 0 : index
    %c0_3 = arith.constant 0 : index
    %c0_4 = arith.constant 0 : index
    %2 = vector.load %arg4[%c0_2, %c0_3, %c0_4] : memref<3x32x16xbf16, #tpu.memory_space<vmem>>, vector<1x32x16xbf16>
    %3 = vector.shape_cast %2 : vector<1x32x16xbf16> to vector<32x16xbf16>
    %cst = arith.constant dense<0.000000e+00> : vector<32x128xf32>
    %4 = tpu.matmul %3, %1, %cst {dimension_numbers = #tpu.dot_dimension_numbers<[1], [0], [0], [1], [0, 0, 1, 1], [], []>} : vector<32x16xbf16>, vector<16x128xbf16>, vector<32x128xf32> -> vector<32x128xf32>
    %5 = vector.extract_strided_slice %1 {offsets = [0, 2], sizes = [16, 126], strides = [1, 1]} : vector<16x128xbf16> to vector<16x126xbf16>
    %c0_5 = arith.constant 0 : index
    %c0_6 = arith.constant 0 : index
    %c0_7 = arith.constant 0 : index
    %6 = vector.load %arg3[%c0_5, %c0_6, %c0_7] : memref<1x16x128xbf16, #tpu.memory_space<vmem>>, vector<1x16x2xbf16>
    %7 = vector.shape_cast %6 : vector<1x16x2xbf16> to vector<16x2xbf16>
    %8 = tpu.concatenate %5, %7 in 1 : vector<16x126xbf16>, vector<16x2xbf16> -> vector<16x128xbf16>
    %c1 = arith.constant 1 : index
    %c0_8 = arith.constant 0 : index
    %c0_9 = arith.constant 0 : index
    %9 = vector.load %arg4[%c1, %c0_8, %c0_9] : memref<3x32x16xbf16, #tpu.memory_space<vmem>>, vector<1x32x16xbf16>
    %10 = vector.shape_cast %9 : vector<1x32x16xbf16> to vector<32x16xbf16>
    %cst_10 = arith.constant dense<0.000000e+00> : vector<32x128xf32>
    %11 = tpu.matmul %10, %8, %cst_10 {dimension_numbers = #tpu.dot_dimension_numbers<[1], [0], [0], [1], [0, 0, 1, 1], [], []>} : vector<32x16xbf16>, vector<16x128xbf16>, vector<32x128xf32> -> vector<32x128xf32>
    %12 = arith.addf %4, %11 : vector<32x128xf32>
    %13 = vector.extract_strided_slice %1 {offsets = [0, 4], sizes = [16, 124], strides = [1, 1]} : vector<16x128xbf16> to vector<16x124xbf16>
    %c0_11 = arith.constant 0 : index
    %c0_12 = arith.constant 0 : index
    %c0_13 = arith.constant 0 : index
    %14 = vector.load %arg3[%c0_11, %c0_12, %c0_13] : memref<1x16x128xbf16, #tpu.memory_space<vmem>>, vector<1x16x4xbf16>
    %15 = vector.shape_cast %14 : vector<1x16x4xbf16> to vector<16x4xbf16>
    %16 = tpu.concatenate %13, %15 in 1 : vector<16x124xbf16>, vector<16x4xbf16> -> vector<16x128xbf16>
    %c2 = arith.constant 2 : index
    %c0_14 = arith.constant 0 : index
    %c0_15 = arith.constant 0 : index
    %17 = vector.load %arg4[%c2, %c0_14, %c0_15] : memref<3x32x16xbf16, #tpu.memory_space<vmem>>, vector<1x32x16xbf16>
    %18 = vector.shape_cast %17 : vector<1x32x16xbf16> to vector<32x16xbf16>
    %cst_16 = arith.constant dense<0.000000e+00> : vector<32x128xf32>
    %19 = tpu.matmul %18, %16, %cst_16 {dimension_numbers = #tpu.dot_dimension_numbers<[1], [0], [0], [1], [0, 0, 1, 1], [], []>} : vector<32x16xbf16>, vector<16x128xbf16>, vector<32x128xf32> -> vector<32x128xf32>
    %20 = arith.addf %12, %19 : vector<32x128xf32>
    %c0_17 = arith.constant 0 : index
    %c0_18 = arith.constant 0 : index
    %21 = vector.load %arg5[%c0_17, %c0_18] : memref<32x1xf32, #tpu.memory_space<vmem>>, vector<32x1xf32>
    %22 = vector.broadcast %21 : vector<32x1xf32> to vector<32x128xf32>
    %23 = arith.addf %20, %22 : vector<32x128xf32>
    %cst_19 = arith.constant 0.000000e+00 : f32
    %24 = vector.broadcast %cst_19 : f32 to vector<32x128xf32>
    %25 = arith.maximumf %23, %24 : vector<32x128xf32>
    %c0_20 = arith.constant 0 : index
    %c0_21 = arith.constant 0 : index
    %26 = vector.load %arg6[%c0_20, %c0_21] : memref<32x2xf32, #tpu.memory_space<vmem>>, vector<32x1xf32>
    %27 = vector.broadcast %26 : vector<32x1xf32> to vector<32x128xf32>
    %28 = arith.mulf %25, %27 : vector<32x128xf32>
    %c0_22 = arith.constant 0 : index
    %c1_23 = arith.constant 1 : index
    %29 = vector.load %arg6[%c0_22, %c1_23] : memref<32x2xf32, #tpu.memory_space<vmem>>, vector<32x1xf32>
    %30 = vector.broadcast %29 : vector<32x1xf32> to vector<32x128xf32>
    %31 = arith.addf %28, %30 : vector<32x128xf32>
    %c0_24 = arith.constant 0 : index
    %c0_25 = arith.constant 0 : index
    %c0_26 = arith.constant 0 : index
    %32 = vector.load %arg7[%c0_24, %c0_25, %c0_26] : memref<1x32x128xf32, #tpu.memory_space<vmem>>, vector<1x32x128xf32>
    %33 = vector.shape_cast %32 : vector<1x32x128xf32> to vector<32x128xf32>
    %34 = vector.shape_cast %31 : vector<32x128xf32> to vector<1x32x128xf32>
    tpu.vector_store %arg7[%c0_24, %c0_25, %c0_26], %34 {strides = array<i32>} : memref<1x32x128xf32, #tpu.memory_space<vmem>>, vector<1x32x128xf32>,
    return
  }
  func.func @transform_0(%arg0: i32, %arg1: i32) -> (i32, i32, i32) {
    %c0_i32 = arith.constant 0 : i32
    %c0_i32_0 = arith.constant 0 : i32
    return %arg0, %c0_i32, %arg1 : i32, i32, i32
  }
  func.func @transform_1(%arg0: i32, %arg1: i32) -> (i32, i32, i32) {
    %c1_i32 = arith.constant 1 : i32
    %0 = arith.addi %arg1, %c1_i32 : i32
    %c1_i32_0 = arith.constant 1 : i32
    %1 = arith.muli %0, %c1_i32_0 : i32
    %c0_i32 = arith.constant 0 : i32
    %c0_i32_1 = arith.constant 0 : i32
    return %arg0, %c0_i32, %1 : i32, i32, i32
  }
  func.func @transform_2(%arg0: i32, %arg1: i32) -> (i32, i32, i32) {
    %c0_i32 = arith.constant 0 : i32
    %c0_i32_0 = arith.constant 0 : i32
    %c0_i32_1 = arith.constant 0 : i32
    %c0_i32_2 = arith.constant 0 : i32
    return %c0_i32, %c0_i32_0, %c0_i32_1 : i32, i32, i32
  }
  func.func @transform_3(%arg0: i32, %arg1: i32) -> (i32, i32) {
    %c0_i32 = arith.constant 0 : i32
    %c0_i32_0 = arith.constant 0 : i32
    %c0_i32_1 = arith.constant 0 : i32
    return %c0_i32, %c0_i32_0 : i32, i32
  }
  func.func @transform_4(%arg0: i32, %arg1: i32) -> (i32, i32) {
    %c0_i32 = arith.constant 0 : i32
    %c0_i32_0 = arith.constant 0 : i32
    %c0_i32_1 = arith.constant 0 : i32
    return %c0_i32, %c0_i32_0 : i32, i32
  }
  func.func @transform_5(%arg0: i32, %arg1: i32) -> (i32, i32, i32) {
    %c0_i32 = arith.constant 0 : i32
    %c0_i32_0 = arith.constant 0 : i32
    return %arg0, %c0_i32, %arg1 : i32, i32, i32
  }
}

</mosaic_0001>

<llo_original>
// kernel: tdnn_layer_forward.2
$region0: #{tdnn_layer_forward.2}
  #allocation0 [shape = 'u32[]', space=smem, size = 0x4, offset = 0x4, fixed_abs, tag = 'smem constant byte address 0x4 - core index']
  #allocation1 [shape = 'u32[144,128]{1,0:T(1,128)}', space=vmem, size = 0x12000, scoped, tag = 'internal scratch']
  %s0 = inlined_call_operand.vmem [shape: bf16[2,16,256], index: 0, kind: input, shape index: {}, may-alias: {0,1}]
  %s1 = inlined_call_operand.vmem [shape: bf16[2,16,256], index: 1, kind: input, shape index: {}, may-alias: {0,1}]
  %s2 = inlined_call_operand.vmem [shape: bf16[3,32,16], index: 2, kind: input, shape index: {}]
  %s3 = inlined_call_operand.vmem [shape: f32[32,1], index: 3, kind: input, shape index: {}]
  %s4 = inlined_call_operand.vmem [shape: f32[2,1,32,2], index: 4, kind: output, shape index: {}]
  %s5 = sld [smem:[#allocation0]]
  $region131: #{tdnn_layer_forward.2} parent=0
    _
  %s7 = ssub.s32 1, %s5
  %s8 = scalar_select 0, %s7, %s5
  $region1: #{tdnn_layer_forward.2} parent=0
    #allocation2 [shape = 'u8[8192]{0}', space=vmem, size = 0x2000, scoped, tag = 'input window, operand 0']
    #allocation3 [shape = 'u8[8192]{0}', space=vmem, size = 0x2000, scoped, tag = 'input window, operand 1']
    loop: start=0, step=1, limit=4
    $region2: #{tdnn_layer_forward.2} parent=1 // loop_pre_header
      _
    $region3: #{tdnn_layer_forward.2} parent=1 // loop_header
      %s10 = sphi 0, %s14
      %p11 = scmp.ge.s32.totalorder %s10, 4
      %s17 = sphi 0, %s29
      %s18 = sphi 0, %s25
      %s19 = sphi 0, %s17
      %s20 = sphi 0, %s18
      %s21 = sphi 0, %s19
      %s22 = sphi 0, %s20
      %s34 = sphi 0, %s36
      %s37 = sphi 0, %s34
      %s38 = sphi 0, %s37
      %s54 = sphi 0, %s38
      %s64 = sphi 0, %s66
      %s67 = sphi 0, %s64
      %s68 = sphi 0, %s67
      %s84 = sphi 0, %s68
      %s88 = sphi 0, %s88
      %s90 = sphi 0, %s88
      %s91 = sphi 0, %s90
      %s105 = sphi 0, %s91
      %s109 = sphi 0, %s109
      %s111 = sphi 0, %s109
      %s112 = sphi 0, %s111
      %s126 = sphi 0, %s112
      %s134 = sphi 0, %s136
      %s137 = sphi 0, %s134
      %s138 = sphi 0, %s137
      %s154 = sphi 0, %s138
    $region4: #{tdnn_layer_forward.2} parent=1 // loop_header_branch
      %13 = sbr.rel (%p11) target = $region8
    $region5: #{tdnn_layer_forward.2} parent=1 // loop_body
      %s15 = ssub.s32 %s10, 1
      %s16 = ssub.s32 %s10, 2
      %s23 = sadd.s32 1, %s18
      %p24 = scmp.ge.s32.totalorder %s23, 1
      %s25 = scalar_select %p24, 0, %s23
      %s26 = sadd.s32 1, %s17
      %s27 = scalar_select %p24, %s26, %s17
      %p28 = scmp.ge.s32.totalorder %s27, 2
      %s29 = scalar_select %p28, 0, %s27
      %s30 = ssub.s32 %s17, %s29
      %s31 = ssub.s32 %s18, %s25
      %s32 = sor.u32 %s30, %s31
      %p33 = scmp.eq.s32.totalorder %s32, 0
      %s35 = sadd.s32 %s34, 1
      %s36 = scalar_select %p33, %s34, %s35
      %p39 = pneg %p33
      %p40 = scmp.eq.s32.totalorder %s10, 1
      %p41 = por %p39, %p40
      %p42 = scmp.ne.s32.totalorder %s34, %s37
      %p43 = scmp.eq.s32.totalorder %s10, 0
      %p44 = por %p42, %p43
      %p45 = scmp.ne.s32.totalorder %s34, %s37
      %p46 = scmp.eq.s32.totalorder %s15, 1
      %p47 = por %p45, %p46
      %p48 = scmp.ne.s32.totalorder %s37, %s38
      %p49 = scmp.eq.s32.totalorder %s15, 0
      %p50 = por %p48, %p49
      %p51 = scmp.ne.s32.totalorder %s37, %s38
      %p52 = scmp.eq.s32.totalorder %s16, 1
      %p53 = por %p51, %p52
      %p55 = scmp.ne.s32.totalorder %s38, %s54
      %p56 = scmp.eq.s32.totalorder %s16, 0
      %p57 = por %p55, %p56
      %s58 = sadd.s32 %s18, 1
      %s59 = sadd.s32 %s25, 1
      %s60 = ssub.s32 %s17, %s29
      %s61 = ssub.s32 %s58, %s59
      %s62 = sor.u32 %s60, %s61
      %p63 = scmp.eq.s32.totalorder %s62, 0
      %s65 = sadd.s32 %s64, 1
      %s66 = scalar_select %p63, %s64, %s65
      %p69 = pneg %p63
      %p70 = scmp.eq.s32.totalorder %s10, 1
      %p71 = por %p69, %p70
      %p72 = scmp.ne.s32.totalorder %s64, %s67
      %p73 = scmp.eq.s32.totalorder %s10, 0
      %p74 = por %p72, %p73
      %p75 = scmp.ne.s32.totalorder %s64, %s67
      %p76 = scmp.eq.s32.totalorder %s15, 1
      %p77 = por %p75, %p76
      %p78 = scmp.ne.s32.totalorder %s67, %s68
      %p79 = scmp.eq.s32.totalorder %s15, 0
      %p80 = por %p78, %p79
      %p81 = scmp.ne.s32.totalorder %s67, %s68
      %p82 = scmp.eq.s32.totalorder %s16, 1
      %p83 = por %p81, %p82
      %p85 = scmp.ne.s32.totalorder %s68, %s84
      %p86 = scmp.eq.s32.totalorder %s16, 0
      %p87 = por %p85, %p86
      %s89 = sadd.s32 %s88, 1
      %p92 = scmp.eq.s32.totalorder %s10, 1
      %p93 = scmp.ne.s32.totalorder %s88, %s90
      %p94 = scmp.eq.s32.totalorder %s10, 0
      %p95 = por %p93, %p94
      %p96 = scmp.ne.s32.totalorder %s88, %s90
      %p97 = scmp.eq.s32.totalorder %s15, 1
      %p98 = por %p96, %p97
      %p99 = scmp.ne.s32.totalorder %s90, %s91
      %p100 = scmp.eq.s32.totalorder %s15, 0
      %p101 = por %p99, %p100
      %p102 = scmp.ne.s32.totalorder %s90, %s91
      %p103 = scmp.eq.s32.totalorder %s16, 1
      %p104 = por %p102, %p103
      %p106 = scmp.ne.s32.totalorder %s91, %s105
      %p107 = scmp.eq.s32.totalorder %s16, 0
      %p108 = por %p106, %p107
      %s110 = sadd.s32 %s109, 1
      %p113 = scmp.eq.s32.totalorder %s10, 1
      %p114 = scmp.ne.s32.totalorder %s109, %s111
      %p115 = scmp.eq.s32.totalorder %s10, 0
      %p116 = por %p114, %p115
      %p117 = scmp.ne.s32.totalorder %s109, %s111
      %p118 = scmp.eq.s32.totalorder %s15, 1
      %p119 = por %p117, %p118
      %p120 = scmp.ne.s32.totalorder %s111, %s112
      %p121 = scmp.eq.s32.totalorder %s15, 0
      %p122 = por %p120, %p121
      %p123 = scmp.ne.s32.totalorder %s111, %s112
      %p124 = scmp.eq.s32.totalorder %s16, 1
      %p125 = por %p123, %p124
      %p127 = scmp.ne.s32.totalorder %s112, %s126
      %p128 = scmp.eq.s32.totalorder %s16, 0
      %p129 = por %p127, %p128
      %s130 = ssub.s32 %s17, %s29
      %s131 = ssub.s32 %s18, %s25
      %s132 = sor.u32 %s130, %s131
      %p133 = scmp.eq.s32.totalorder %s132, 0
      %s135 = sadd.s32 %s134, 1
      %s136 = scalar_select %p133, %s134, %s135
      %p139 = pneg %p133
      %p140 = scmp.eq.s32.totalorder %s10, 1
      %p141 = por %p139, %p140
      %p142 = scmp.ne.s32.totalorder %s134, %s137
      %p143 = scmp.eq.s32.totalorder %s10, 0
      %p144 = por %p142, %p143
      %p145 = scmp.ne.s32.totalorder %s134, %s137
      %p146 = scmp.eq.s32.totalorder %s15, 1
      %p147 = por %p145, %p146
      %p148 = scmp.ne.s32.totalorder %s137, %s138
      %p149 = scmp.eq.s32.totalorder %s15, 0
      %p150 = por %p148, %p149
      %p151 = scmp.ne.s32.totalorder %s137, %s138
      %p152 = scmp.eq.s32.totalorder %s16, 1
      %p153 = por %p151, %p152
      %p155 = scmp.ne.s32.totalorder %s138, %s154
      %p156 = scmp.eq.s32.totalorder %s16, 0
      %p157 = por %p155, %p156
      %p158 = scmp.le.s32.totalorder 1, %s10
      %p159 = scmp.lt.s32.totalorder %s10, 3
      %p160 = pnand %p158, %p159
      %p161 = pneg %p160
      // Predicated region
      $region9: #{tdnn_layer_forward.2} parent=5 // pred_check
        _
      $region10: #{tdnn_layer_forward.2} parent=5 // pred_check_branch
        %163 = sbr.rel (%p160) target = $region12
      $region11: #{tdnn_layer_forward.2} parent=5 // pred_region
        %s164 = ssub.s32 %s10, 1
        // Predicated region
        $region13: #{tdnn_layer_forward.2} parent=11 // pred_check
          %p165 = pneg %p101
        $region14: #{tdnn_layer_forward.2} parent=11 // pred_check_branch
          %167 = sbr.rel (%p165) target = $region16
        $region15: #{tdnn_layer_forward.2} parent=11 // pred_region
          _
        $region16: #{tdnn_layer_forward.2} parent=11 // pred_fallthru
          _
        // Predicated region
        $region17: #{tdnn_layer_forward.2} parent=11 // pred_check
          %p168 = pneg %p122
        $region18: #{tdnn_layer_forward.2} parent=11 // pred_check_branch
          %170 = sbr.rel (%p168) target = $region20
        $region19: #{tdnn_layer_forward.2} parent=11 // pred_region
          _
        $region20: #{tdnn_layer_forward.2} parent=11 // pred_fallthru
          _
      $region12: #{tdnn_layer_forward.2} parent=5 // pred_fallthru
        _
      %p171 = scmp.lt.s32.totalorder %s10, 2
      // Predicated region
      $region21: #{tdnn_layer_forward.2} parent=5 // pred_check
        %p172 = pneg %p171
      $region22: #{tdnn_layer_forward.2} parent=5 // pred_check_branch
        %174 = sbr.rel (%p172) target = $region24
      $region23: #{tdnn_layer_forward.2} parent=5 // pred_region
        // Predicated region
        $region25: #{tdnn_layer_forward.2} parent=23 // pred_check
          %p175 = pneg %p44
        $region26: #{tdnn_layer_forward.2} parent=23 // pred_check_branch
          %177 = sbr.rel (%p175) target = $region28
        $region27: #{tdnn_layer_forward.2} parent=23 // pred_region
          %s178 = sand.u32 %s34, 1
          %s179 = sand.u32 %s34, 1
          %s180 = smul.addr %s179, 8
          %s181 = scalar_lea.vmem [#allocation2], %s180
          %s182 = smul.addr %s17, 4
          %s183 = sadd.s32 %s18, %s182
          %s184 = smul.addr %s183, 4
          %s185 = scalar_lea.vmem %s0, %s184
          // Predicated region
          $region29: #{tdnn_layer_forward.2} parent=27 // pred_check
            _
          $region30: #{tdnn_layer_forward.2} parent=27 // pred_check_branch
            %187 = sbr.rel (0) target = $region32
          $region31: #{tdnn_layer_forward.2} parent=27 // pred_region
            // Predicated region
            $region33: #{tdnn_layer_forward.2} parent=31 // pred_check
              _
            $region34: #{tdnn_layer_forward.2} parent=31 // pred_check_branch
              %189 = sbr.rel target = $region36
            $region35: #{tdnn_layer_forward.2} parent=31 // pred_region
              // Predicated region
              $region48: #{tdnn_layer_forward.2} parent=35 // pred_check
                _
              $region49: #{tdnn_layer_forward.2} parent=35 // pred_check_branch
                %206 = sbr.rel (0) target = $region51
              $region50: #{tdnn_layer_forward.2} parent=35 // pred_region
                loop: start=0, step=1, limit=1
                $region52: #{tdnn_layer_forward.2} parent=50 // loop_pre_header
                  _
                $region53: #{tdnn_layer_forward.2} parent=50 // loop_header
                  %s208 = sphi 0, %s212
                  %p209 = scmp.ge.s32.totalorder %s208, 1
                  %s213 = sphi %s185, %s185
                  %s214 = sphi %s181, %s181
                $region54: #{tdnn_layer_forward.2} parent=50 // loop_header_branch
                  %211 = sbr.rel (%p209) target = $region58
                $region55: #{tdnn_layer_forward.2} parent=50 // loop_body
                  _
                $region56: #{tdnn_layer_forward.2} parent=50 // loop_footer
                  %s212 = sadd.s32 1, %s208
                $region57: #{tdnn_layer_forward.2} parent=50 // loop_footer_branch
                  %207 = sbr.rel target = $region53
                $region58: #{tdnn_layer_forward.2} parent=50 // loop_exit
                  _
                loop: start=0, step=1, limit=1
                $region59: #{tdnn_layer_forward.2} parent=50 // loop_pre_header
                  _
                $region60: #{tdnn_layer_forward.2} parent=50 // loop_header
                  %s217 = sphi 0, %s221
                  %p218 = scmp.ge.s32.totalorder %s217, 1
                  %s222 = sphi %s185, %s185
                  %s223 = sphi %s181, %s181
                $region61: #{tdnn_layer_forward.2} parent=50 // loop_header_branch
                  %220 = sbr.rel (%p218) target = $region65
                $region62: #{tdnn_layer_forward.2} parent=50 // loop_body
                  %v224 = vld [vmem:[%s222] sm:$0xf]
                  %225 = vst [vmem:[%s223] sm:$0xf] %v224
                  %v226 = vld [vmem:[%s222 + $0x8] sm:$0xf]
                  %227 = vst [vmem:[%s223 + $0x4] sm:$0xf] %v226
                $region63: #{tdnn_layer_forward.2} parent=50 // loop_footer
                  %s221 = sadd.s32 1, %s217
                $region64: #{tdnn_layer_forward.2} parent=50 // loop_footer_branch
                  %216 = sbr.rel target = $region60
                $region65: #{tdnn_layer_forward.2} parent=50 // loop_exit
                  _
              $region51: #{tdnn_layer_forward.2} parent=35 // pred_fallthru
                _
            $region36: #{tdnn_layer_forward.2} parent=31 // pred_fallthru
              _
            // Predicated region
            $region37: #{tdnn_layer_forward.2} parent=31 // pred_check
              _
            $region38: #{tdnn_layer_forward.2} parent=31 // pred_check_branch
              %191 = sbr.rel (0) target = $region40
            $region39: #{tdnn_layer_forward.2} parent=31 // pred_region
              loop: start=0, step=1, limit=1
              $region41: #{tdnn_layer_forward.2} parent=39 // loop_pre_header
                _
              $region42: #{tdnn_layer_forward.2} parent=39 // loop_header
                %s194 = sphi 0, %s198
                %p195 = scmp.ge.s32.totalorder %s194, 1
                %s199 = sphi %s185, %s185
                %s200 = sphi %s181, %s181
              $region43: #{tdnn_layer_forward.2} parent=39 // loop_header_branch
                %197 = sbr.rel (%p195) target = $region47
              $region44: #{tdnn_layer_forward.2} parent=39 // loop_body
                %v201 = vld [vmem:[%s199] sm:$0xf]
                %202 = vst [vmem:[%s200] sm:$0xf] %v201
                %v203 = vld [vmem:[%s199 + $0x8] sm:$0xf]
                %204 = vst [vmem:[%s200 + $0x4] sm:$0xf] %v203
              $region45: #{tdnn_layer_forward.2} parent=39 // loop_footer
                %s198 = sadd.s32 1, %s194
              $region46: #{tdnn_layer_forward.2} parent=39 // loop_footer_branch
                %193 = sbr.rel target = $region42
              $region47: #{tdnn_layer_forward.2} parent=39 // loop_exit
                _
            $region40: #{tdnn_layer_forward.2} parent=31 // pred_fallthru
              _
          $region32: #{tdnn_layer_forward.2} parent=27 // pred_fallthru
            _
          %228 = vnop
        $region28: #{tdnn_layer_forward.2} parent=23 // pred_fallthru
          _
        // Predicated region
        $region66: #{tdnn_layer_forward.2} parent=23 // pred_check
          %p229 = pneg %p74
        $region67: #{tdnn_layer_forward.2} parent=23 // pred_check_branch
          %231 = sbr.rel (%p229) target = $region69
        $region68: #{tdnn_layer_forward.2} parent=23 // pred_region
          %s232 = sand.u32 %s64, 1
          %s233 = sand.u32 %s64, 1
          %s234 = smul.addr %s233, 8
          %s235 = scalar_lea.vmem [#allocation3], %s234
          %s236 = sadd.s32 %s18, 1
          %s237 = smul.addr %s17, 4
          %s238 = sadd.s32 %s236, %s237
          %s239 = smul.addr %s238, 4
          %s240 = scalar_lea.vmem %s1, %s239
          // Predicated region
          $region70: #{tdnn_layer_forward.2} parent=68 // pred_check
            _
          $region71: #{tdnn_layer_forward.2} parent=68 // pred_check_branch
            %242 = sbr.rel (0) target = $region73
          $region72: #{tdnn_layer_forward.2} parent=68 // pred_region
            // Predicated region
            $region74: #{tdnn_layer_forward.2} parent=72 // pred_check
              _
            $region75: #{tdnn_layer_forward.2} parent=72 // pred_check_branch
              %244 = sbr.rel target = $region77
            $region76: #{tdnn_layer_forward.2} parent=72 // pred_region
              // Predicated region
              $region89: #{tdnn_layer_forward.2} parent=76 // pred_check
                _
              $region90: #{tdnn_layer_forward.2} parent=76 // pred_check_branch
                %261 = sbr.rel (0) target = $region92
              $region91: #{tdnn_layer_forward.2} parent=76 // pred_region
                loop: start=0, step=1, limit=1
                $region93: #{tdnn_layer_forward.2} parent=91 // loop_pre_header
                  _
                $region94: #{tdnn_layer_forward.2} parent=91 // loop_header
                  %s263 = sphi 0, %s267
                  %p264 = scmp.ge.s32.totalorder %s263, 1
                  %s268 = sphi %s240, %s240
                  %s269 = sphi %s235, %s235
                $region95: #{tdnn_layer_forward.2} parent=91 // loop_header_branch
                  %266 = sbr.rel (%p264) target = $region99
                $region96: #{tdnn_layer_forward.2} parent=91 // loop_body
                  _
                $region97: #{tdnn_layer_forward.2} parent=91 // loop_footer
                  %s267 = sadd.s32 1, %s263
                $region98: #{tdnn_layer_forward.2} parent=91 // loop_footer_branch
                  %262 = sbr.rel target = $region94
                $region99: #{tdnn_layer_forward.2} parent=91 // loop_exit
                  _
                loop: start=0, step=1, limit=1
                $region100: #{tdnn_layer_forward.2} parent=91 // loop_pre_header
                  _
                $region101: #{tdnn_layer_forward.2} parent=91 // loop_header
                  %s272 = sphi 0, %s276
                  %p273 = scmp.ge.s32.totalorder %s272, 1
                  %s277 = sphi %s240, %s240
                  %s278 = sphi %s235, %s235
                $region102: #{tdnn_layer_forward.2} parent=91 // loop_header_branch
                  %275 = sbr.rel (%p273) target = $region106
                $region103: #{tdnn_layer_forward.2} parent=91 // loop_body
                  %v279 = vld [vmem:[%s277] sm:$0xf]
                  %280 = vst [vmem:[%s278] sm:$0xf] %v279
                  %v281 = vld [vmem:[%s277 + $0x8] sm:$0xf]
                  %282 = vst [vmem:[%s278 + $0x4] sm:$0xf] %v281
                $region104: #{tdnn_layer_forward.2} parent=91 // loop_footer
                  %s276 = sadd.s32 1, %s272
                $region105: #{tdnn_layer_forward.2} parent=91 // loop_footer_branch
                  %271 = sbr.rel target = $region101
                $region106: #{tdnn_layer_forward.2} parent=91 // loop_exit
                  _
              $region92: #{tdnn_layer_forward.2} parent=76 // pred_fallthru
                _
            $region77: #{tdnn_layer_forward.2} parent=72 // pred_fallthru
              _
            // Predicated region
            $region78: #{tdnn_layer_forward.2} parent=72 // pred_check
              _
            $region79: #{tdnn_layer_forward.2} parent=72 // pred_check_branch
              %246 = sbr.rel (0) target = $region81
            $region80: #{tdnn_layer_forward.2} parent=72 // pred_region
              loop: start=0, step=1, limit=1
              $region82: #{tdnn_layer_forward.2} parent=80 // loop_pre_header
                _
              $region83: #{tdnn_layer_forward.2} parent=80 // loop_header
                %s249 = sphi 0, %s253
                %p250 = scmp.ge.s32.totalorder %s249, 1
                %s254 = sphi %s240, %s240
                %s255 = sphi %s235, %s235
              $region84: #{tdnn_layer_forward.2} parent=80 // loop_header_branch
                %252 = sbr.rel (%p250) target = $region88
              $region85: #{tdnn_layer_forward.2} parent=80 // loop_body
                %v256 = vld [vmem:[%s254] sm:$0xf]
                %257 = vst [vmem:[%s255] sm:$0xf] %v256
                %v258 = vld [vmem:[%s254 + $0x8] sm:$0xf]
                %259 = vst [vmem:[%s255 + $0x4] sm:$0xf] %v258
              $region86: #{tdnn_layer_forward.2} parent=80 // loop_footer
                %s253 = sadd.s32 1, %s249
              $region87: #{tdnn_layer_forward.2} parent=80 // loop_footer_branch
                %248 = sbr.rel target = $region83
              $region88: #{tdnn_layer_forward.2} parent=80 // loop_exit
                _
            $region81: #{tdnn_layer_forward.2} parent=72 // pred_fallthru
              _
          $region73: #{tdnn_layer_forward.2} parent=68 // pred_fallthru
            _
          %283 = vnop
        $region69: #{tdnn_layer_forward.2} parent=23 // pred_fallthru
          _
      $region24: #{tdnn_layer_forward.2} parent=5 // pred_fallthru
        _
      %p284 = scmp.le.s32.totalorder 1, %s10
      %p285 = scmp.lt.s32.totalorder %s10, 3
      %p286 = pnand %p284, %p285
      %p287 = pneg %p286
      // Predicated region
      $region107: #{tdnn_layer_forward.2} parent=5 // pred_check
        _
      $region108: #{tdnn_layer_forward.2} parent=5 // pred_check_branch
        %289 = sbr.rel (%p286) target = $region110
      $region109: #{tdnn_layer_forward.2} parent=5 // pred_region
        %s290 = ssub.s32 %s10, 1
        %s291 = sand.u32 %s37, 1
        %s292 = sand.u32 %s37, 1
        %s293 = smul.addr %s292, 8
        %s294 = scalar_lea.vmem [#allocation2], %s293
        // Predicated region
        $region111: #{tdnn_layer_forward.2} parent=109 // pred_check
          %p295 = pneg %p50
        $region112: #{tdnn_layer_forward.2} parent=109 // pred_check_branch
          %297 = sbr.rel (%p295) target = $region114
        $region113: #{tdnn_layer_forward.2} parent=109 // pred_region
          _
        $region114: #{tdnn_layer_forward.2} parent=109 // pred_fallthru
          _
        %s298 = sand.u32 %s67, 1
        %s299 = sand.u32 %s67, 1
        %s300 = smul.addr %s299, 8
        %s301 = scalar_lea.vmem [#allocation3], %s300
        // Predicated region
        $region115: #{tdnn_layer_forward.2} parent=109 // pred_check
          %p302 = pneg %p80
        $region116: #{tdnn_layer_forward.2} parent=109 // pred_check_branch
          %304 = sbr.rel (%p302) target = $region118
        $region117: #{tdnn_layer_forward.2} parent=109 // pred_region
          _
        $region118: #{tdnn_layer_forward.2} parent=109 // pred_fallthru
          _
        %s305 = sand.u32 %s37, 1
        %s306 = sand.u32 %s37, 1
        %s307 = smul.addr %s306, 8
        %s308 = scalar_lea.vmem [#allocation2], %s307
        %p309 = pneg %p50
        %p310 = pneg %p47
        %s311 = sand.u32 %s67, 1
        %s312 = sand.u32 %s67, 1
        %s313 = smul.addr %s312, 8
        %s314 = scalar_lea.vmem [#allocation3], %s313
        %p315 = pneg %p80
        %p316 = pneg %p77
        %p317 = pneg %p101
        %p318 = pneg %p98
        %p319 = pneg %p122
        %p320 = pneg %p119
        %p321 = pneg %p150
        %p322 = pneg %p147
        %p323 = scmp.lt.s32.totalorder %s19, 1
        %s324 = scalar_select %p323, %s19, 1
        %p325 = scmp.lt.s32.totalorder %s20, 0
        %s326 = scalar_select %p325, %s20, 0
        %s327 = smul.addr %s326, 4
        %s328 = smul.addr %s324, 4
        %s329 = sadd.s32 %s327, %s328
        %s330 = smul.addr %s329, 8
        %s331 = scalar_lea.vmem %s4, %s330
        %s332 = sadd.s32 %s20, 1
        %p333 = scmp.lt.s32.totalorder %s19, 1
        %s334 = scalar_select %p333, %s19, 1
        %p335 = scmp.lt.s32.totalorder %s20, 0
        %s336 = scalar_select %p335, %s20, 0
        %s337 = smul.addr %s336, 4
        %s338 = smul.addr %s334, 4
        %s339 = sadd.s32 %s337, %s338
        %s340 = smul.addr %s339, 8
        %s341 = scalar_lea.vmem %s4, %s340
        %v343 = vld [vmem:[%s294] sm:$0xf]
        %v344 = vld [vmem:[%s294 + $0x4] sm:$0xf]
        %v345 = vld [vmem:[%s2] sm:$0xf]
        %v346 = vld [vmem:[%s2 + $0x4] sm:$0xf]
        %v347 = vld [vmem:[%s2 + $0x8] sm:$0xf]
        %v348 = vld [vmem:[%s2 + $0xc] sm:$0xf]
        %v349 = vld [vmem:[%s301] sm:$0xf]
        %v350 = vld [vmem:[%s301 + $0x4] sm:$0xf]
        %v353 = vunpack.c.l.b16 %v343
        %v354 = vunpack.c.l.b16 %v344
        %v355 = vpack.c.b16 %v354, %v353
        %356 = vrot.lane.b32.xlu0 %v355, 126
        %v357 = vpop.permute.xlu0 %356
        %v360 = vunpack.c.l.b16 %v349
        %v361 = vunpack.c.l.b16 %v350
        %v362 = vpack.c.b16 %v361, %v360
        %363 = vrot.lane.b32.xlu0 %v362, 126
        %v364 = vpop.permute.xlu0 %363
        %vm365 = vcmask 1031168
        %v368 = vsel %vm365, %v357, %v364
        %s370 = scalar_lea.vmem %s2, 16
        %v371 = vld [vmem:[%s370] sm:$0xf]
        %v372 = vld [vmem:[%s370 + $0x4] sm:$0xf]
        %v373 = vld [vmem:[%s370 + $0x8] sm:$0xf]
        %v374 = vld [vmem:[%s370 + $0xc] sm:$0xf]
        %v379 = vunpack.c.l.b16 %v371
        %v380 = vunpack.c.l.b16 %v372
        %v381 = vunpack.c.l.b16 %v373
        %v382 = vunpack.c.l.b16 %v374
        %v383 = vpack.c.b16 %v380, %v379
        %v384 = vpack.c.b16 %v382, %v381
        %vm385 = vcmask 130048
        %v387 = vsel %vm385, %v383, 0
        %v390 = vsel %vm385, %v384, 0
        %392 = vmatprep.subr.bf16.mxu0 0
        %393 = vmatpush1.bf16.msra.mxu0 %v368
        %394 = vmatprep.subr.bf16.mxu0 0
        %395 = vmatpush1.bf16.msra.mxu0 0
        %396 = vmatprep.subr.bf16.mxu0 0
        %397 = vmatpush1.bf16.msra.mxu0 0
        %398 = vmatprep.subr.bf16.mxu0 0
        %399 = vmatpush1.bf16.msra.mxu0 0
        %400 = vmatprep.subr.bf16.mxu0 0
        %401 = vmatpush1.bf16.msra.mxu0 0
        %402 = vmatprep.subr.bf16.mxu0 0
        %403 = vmatpush1.bf16.msra.mxu0 0
        %404 = vmatprep.subr.bf16.mxu0 0
        %405 = vmatpush1.bf16.msra.mxu0 0
        %406 = vmatprep.subr.bf16.mxu0 0
        %407 = vmatpush1.bf16.msra.mxu0 0
        %408 = vmatprep.subr.bf16.mxu0 0
        %409 = vmatpush1.bf16.msra.mxu0 0
        %410 = vmatprep.subr.bf16.mxu0 0
        %411 = vmatpush1.bf16.msra.mxu0 0
        %412 = vmatprep.subr.bf16.mxu0 0
        %413 = vmatpush1.bf16.msra.mxu0 0
        %414 = vmatprep.subr.bf16.mxu0 0
        %415 = vmatpush1.bf16.msra.mxu0 0
        %416 = vmatprep.subr.bf16.mxu0 0
        %417 = vmatpush1.bf16.msra.mxu0 0
        %418 = vmatprep.subr.bf16.mxu0 0
        %419 = vmatpush1.bf16.msra.mxu0 0
        %420 = vmatprep.subr.bf16.mxu0 0
        %421 = vmatpush1.bf16.msra.mxu0 0
        %422 = vmatprep.subr.bf16.mxu0 0
        %423 = vmatpush1.bf16.msra.mxu0 0
        %424 = vmatprep.mubr.bf16.mxu0 0
        %425 = vmatmul.mubr.bf16.gmra.mrb[0].mxu0 %v387
        %v426 = vpop.f32.mrb[0].mxu0
        %v427 = vadd.f32 0.0, %v426
        %v428 = vpop.f32.mrb[0].mxu0
        %v429 = vpop.f32.mrb[0].mxu0
        %v430 = vadd.f32 0.0, %v429
        %v431 = vpop.f32.mrb[0].mxu0
        %432 = vmatprep.mubr.bf16.mxu0 0
        %433 = vmatmul.mubr.bf16.gmra.mrb[0].mxu0 %v390
        %v434 = vpop.f32.mrb[0].mxu0
        %v435 = vadd.f32 0.0, %v434
        %v436 = vpop.f32.mrb[0].mxu0
        %v437 = vpop.f32.mrb[0].mxu0
        %v438 = vadd.f32 0.0, %v437
        %v439 = vpop.f32.mrb[0].mxu0
        %440 = vdwg.mxu0
        %v445 = vunpack.c.l.b16 %v345
        %v446 = vunpack.c.l.b16 %v346
        %v447 = vunpack.c.l.b16 %v347
        %v448 = vunpack.c.l.b16 %v348
        %v449 = vpack.c.b16 %v446, %v445
        %v450 = vpack.c.b16 %v448, %v447
        %v453 = vsel %vm385, %v449, 0
        %v456 = vsel %vm385, %v450, 0
        %458 = vmatprep.subr.bf16.mxu0 0
        %459 = vmatpush1.bf16.msra.mxu0 %v355
        %460 = vmatprep.subr.bf16.mxu0 0
        %461 = vmatpush1.bf16.msra.mxu0 0
        %462 = vmatprep.subr.bf16.mxu0 0
        %463 = vmatpush1.bf16.msra.mxu0 0
        %464 = vmatprep.subr.bf16.mxu0 0
        %465 = vmatpush1.bf16.msra.mxu0 0
        %466 = vmatprep.subr.bf16.mxu0 0
        %467 = vmatpush1.bf16.msra.mxu0 0
        %468 = vmatprep.subr.bf16.mxu0 0
        %469 = vmatpush1.bf16.msra.mxu0 0
        %470 = vmatprep.subr.bf16.mxu0 0
        %471 = vmatpush1.bf16.msra.mxu0 0
        %472 = vmatprep.subr.bf16.mxu0 0
        %473 = vmatpush1.bf16.msra.mxu0 0
        %474 = vmatprep.subr.bf16.mxu0 0
        %475 = vmatpush1.bf16.msra.mxu0 0
        %476 = vmatprep.subr.bf16.mxu0 0
        %477 = vmatpush1.bf16.msra.mxu0 0
        %478 = vmatprep.subr.bf16.mxu0 0
        %479 = vmatpush1.bf16.msra.mxu0 0
        %480 = vmatprep.subr.bf16.mxu0 0
        %481 = vmatpush1.bf16.msra.mxu0 0
        %482 = vmatprep.subr.bf16.mxu0 0
        %483 = vmatpush1.bf16.msra.mxu0 0
        %484 = vmatprep.subr.bf16.mxu0 0
        %485 = vmatpush1.bf16.msra.mxu0 0
        %486 = vmatprep.subr.bf16.mxu0 0
        %487 = vmatpush1.bf16.msra.mxu0 0
        %488 = vmatprep.subr.bf16.mxu0 0
        %489 = vmatpush1.bf16.msra.mxu0 0
        %490 = vmatprep.mubr.bf16.mxu0 0
        %491 = vmatmul.mubr.bf16.gmra.mrb[0].mxu0 %v453
        %v492 = vpop.f32.mrb[0].mxu0
        %v493 = vadd.f32 %v427, %v492
        %v494 = vpop.f32.mrb[0].mxu0
        %v495 = vpop.f32.mrb[0].mxu0
        %v496 = vadd.f32 %v430, %v495
        %v497 = vpop.f32.mrb[0].mxu0
        %498 = vmatprep.mubr.bf16.mxu0 0
        %499 = vmatmul.mubr.bf16.gmra.mrb[0].mxu0 %v456
        %v500 = vpop.f32.mrb[0].mxu0
        %v501 = vadd.f32 %v435, %v500
        %v502 = vpop.f32.mrb[0].mxu0
        %v503 = vpop.f32.mrb[0].mxu0
        %v504 = vadd.f32 %v438, %v503
        %v505 = vpop.f32.mrb[0].mxu0
        %506 = vdwg.mxu0
        %507 = vrot.lane.b32.xlu0 %v355, 124
        %v508 = vpop.permute.xlu0 %507
        %509 = vrot.lane.b32.xlu0 %v362, 124
        %v510 = vpop.permute.xlu0 %509
        %vm511 = vcmask 1014784
        %v514 = vsel %vm511, %v508, %v510
        %s516 = scalar_lea.vmem %s2, 32
        %v517 = vld [vmem:[%s516] sm:$0xf]
        %v518 = vld [vmem:[%s516 + $0x4] sm:$0xf]
        %v519 = vld [vmem:[%s516 + $0x8] sm:$0xf]
        %v520 = vld [vmem:[%s516 + $0xc] sm:$0xf]
        %v525 = vunpack.c.l.b16 %v517
        %v526 = vunpack.c.l.b16 %v518
        %v527 = vunpack.c.l.b16 %v519
        %v528 = vunpack.c.l.b16 %v520
        %v529 = vpack.c.b16 %v526, %v525
        %v530 = vpack.c.b16 %v528, %v527
        %v532 = vsel %vm385, %v529, 0
        %v535 = vsel %vm385, %v530, 0
        %537 = vmatprep.subr.bf16.mxu0 0
        %538 = vmatpush1.bf16.msra.mxu0 %v514
        %539 = vmatprep.subr.bf16.mxu0 0
        %540 = vmatpush1.bf16.msra.mxu0 0
        %541 = vmatprep.subr.bf16.mxu0 0
        %542 = vmatpush1.bf16.msra.mxu0 0
        %543 = vmatprep.subr.bf16.mxu0 0
        %544 = vmatpush1.bf16.msra.mxu0 0
        %545 = vmatprep.subr.bf16.mxu0 0
        %546 = vmatpush1.bf16.msra.mxu0 0
        %547 = vmatprep.subr.bf16.mxu0 0
        %548 = vmatpush1.bf16.msra.mxu0 0
        %549 = vmatprep.subr.bf16.mxu0 0
        %550 = vmatpush1.bf16.msra.mxu0 0
        %551 = vmatprep.subr.bf16.mxu0 0
        %552 = vmatpush1.bf16.msra.mxu0 0
        %553 = vmatprep.subr.bf16.mxu0 0
        %554 = vmatpush1.bf16.msra.mxu0 0
        %555 = vmatprep.subr.bf16.mxu0 0
        %556 = vmatpush1.bf16.msra.mxu0 0
        %557 = vmatprep.subr.bf16.mxu0 0
        %558 = vmatpush1.bf16.msra.mxu0 0
        %559 = vmatprep.subr.bf16.mxu0 0
        %560 = vmatpush1.bf16.msra.mxu0 0
        %561 = vmatprep.subr.bf16.mxu0 0
        %562 = vmatpush1.bf16.msra.mxu0 0
        %563 = vmatprep.subr.bf16.mxu0 0
        %564 = vmatpush1.bf16.msra.mxu0 0
        %565 = vmatprep.subr.bf16.mxu0 0
        %566 = vmatpush1.bf16.msra.mxu0 0
        %567 = vmatprep.subr.bf16.mxu0 0
        %568 = vmatpush1.bf16.msra.mxu0 0
        %569 = vmatprep.mubr.bf16.mxu0 0
        %570 = vmatmul.mubr.bf16.gmra.mrb[0].mxu0 %v532
        %v571 = vpop.f32.mrb[0].mxu0
        %v572 = vadd.f32 0.0, %v571
        %v573 = vpop.f32.mrb[0].mxu0
        %v574 = vpop.f32.mrb[0].mxu0
        %v575 = vadd.f32 0.0, %v574
        %v576 = vpop.f32.mrb[0].mxu0
        %577 = vmatprep.mubr.bf16.mxu0 0
        %578 = vmatmul.mubr.bf16.gmra.mrb[0].mxu0 %v535
        %v579 = vpop.f32.mrb[0].mxu0
        %v580 = vadd.f32 0.0, %v579
        %v581 = vpop.f32.mrb[0].mxu0
        %v582 = vpop.f32.mrb[0].mxu0
        %v583 = vadd.f32 0.0, %v582
        %v584 = vpop.f32.mrb[0].mxu0
        %585 = vdwg.mxu0
        %v586 = vadd.f32 %v493, %v572
        %v587 = vadd.f32 %v496, %v575
        %v588 = vadd.f32 %v501, %v580
        %v589 = vadd.f32 %v504, %v583
        %v590 = vld [vmem:[%s3] sm:$0xff]
        %v591 = vld [vmem:[%s3 + $0x8] sm:$0xff]
        %v592 = vld [vmem:[%s3 + $0x10] sm:$0xff]
        %v593 = vld [vmem:[%s3 + $0x18] sm:$0xff]
        %595 = vset.pattern.permute.xlu0 0
        %596 = vperm.xlu0 %595, %v590
        %v597 = vpop.permute.xlu0 %596
        %600 = vset.pattern.permute.xlu0 0
        %601 = vperm.xlu0 %600, %v591
        %v602 = vpop.permute.xlu0 %601
        %605 = vset.pattern.permute.xlu0 0
        %606 = vperm.xlu0 %605, %v592
        %v607 = vpop.permute.xlu0 %606
        %610 = vset.pattern.permute.xlu0 0
        %611 = vperm.xlu0 %610, %v593
        %v612 = vpop.permute.xlu0 %611
        %v614 = vadd.f32 %v586, %v597
        %v615 = vadd.f32 %v587, %v602
        %v616 = vadd.f32 %v588, %v607
        %v617 = vadd.f32 %v589, %v612
        %v618 = vmax.f32 %v614, 0.0
        %v619 = vmax.f32 %v615, 0.0
        %v620 = vmax.f32 %v616, 0.0
        %v621 = vmax.f32 %v617, 0.0
        %v622 = vlaneseq
        %v623 = vand.u32 %v622, 127
        %s624 = smul.u32 %s20, 128
        %v625 = vstv %s624
        %v626 = vadd.s32 %v625, %v623
        %vm627 = vcmp.lt.s32.totalorder %v626, 30
        %v628 = vsel %vm627, 1, 0
        %vm629 = vcmp.eq.s32.totalorder %v628, 1
        %v630 = vsel %vm629, %v618, 0.0
        %v631 = vsel %vm629, %v619, 0.0
        %v632 = vsel %vm629, %v620, 0.0
        %v633 = vsel %vm629, %v621, 0.0
        %634 = vadd.xlane.f32.xlu0 %v630
        %v635 = vpop.xlane.xlu0 %634
        %636 = vadd.xlane.f32.xlu0 %v631
        %v637 = vpop.xlane.xlu0 %636
        %638 = vadd.xlane.f32.xlu0 %v632
        %v639 = vpop.xlane.xlu0 %638
        %640 = vadd.xlane.f32.xlu0 %v633
        %v641 = vpop.xlane.xlu0 %640
        %v642 = vmul.f32 %v630, %v630
        %v643 = vmul.f32 %v631, %v631
        %v644 = vmul.f32 %v632, %v632
        %v645 = vmul.f32 %v633, %v633
        %646 = vadd.xlane.f32.xlu0 %v642
        %v647 = vpop.xlane.xlu0 %646
        %648 = vadd.xlane.f32.xlu0 %v643
        %v649 = vpop.xlane.xlu0 %648
        %650 = vadd.xlane.f32.xlu0 %v644
        %v651 = vpop.xlane.xlu0 %650
        %652 = vadd.xlane.f32.xlu0 %v645
        %v653 = vpop.xlane.xlu0 %652
        %vm654 = vcmask 7168
        %v655 = vsel %vm654, %v635, %v647
        %v656 = vsel %vm654, %v637, %v649
        %v657 = vsel %vm654, %v639, %v651
        %v658 = vsel %vm654, %v641, %v653
        %vm659 = vcmask 15360
        %660 = vst.msk [vmem:[%s341] sm:$0xff] %vm659, %v655
        %661 = vst.msk [vmem:[%s341 + $0x8] sm:$0xff] %vm659, %v656
        %662 = vst.msk [vmem:[%s341 + $0x10] sm:$0xff] %vm659, %v657
        %663 = vst.msk [vmem:[%s341 + $0x18] sm:$0xff] %vm659, %v658
        %p664 = scmp.lt.s32.totalorder %s19, 1
        %s665 = scalar_select %p664, %s19, 1
        %p666 = scmp.lt.s32.totalorder %s20, 0
        %s667 = scalar_select %p666, %s20, 0
        %s668 = smul.addr %s667, 4
        %s669 = smul.addr %s665, 4
        %s670 = sadd.s32 %s668, %s669
        %s671 = smul.addr %s670, 8
        %s672 = scalar_lea.vmem %s4, %s671
        // Predicated region
        $region119: #{tdnn_layer_forward.2} parent=109 // pred_check
          %p673 = pneg %p147
        $region120: #{tdnn_layer_forward.2} parent=109 // pred_check_branch
          %675 = sbr.rel (%p673) target = $region122
        $region121: #{tdnn_layer_forward.2} parent=109 // pred_region
          _
        $region122: #{tdnn_layer_forward.2} parent=109 // pred_fallthru
          _
      $region110: #{tdnn_layer_forward.2} parent=5 // pred_fallthru
        _
      %p676 = scmp.le.s32.totalorder 2, %s10
      // Predicated region
      $region123: #{tdnn_layer_forward.2} parent=5 // pred_check
        %p677 = pneg %p676
      $region124: #{tdnn_layer_forward.2} parent=5 // pred_check_branch
        %679 = sbr.rel (%p677) target = $region126
      $region125: #{tdnn_layer_forward.2} parent=5 // pred_region
        %s680 = ssub.s32 %s10, 2
        // Predicated region
        $region127: #{tdnn_layer_forward.2} parent=125 // pred_check
          %p681 = pneg %p153
        $region128: #{tdnn_layer_forward.2} parent=125 // pred_check_branch
          %683 = sbr.rel (%p681) target = $region130
        $region129: #{tdnn_layer_forward.2} parent=125 // pred_region
          %p684 = scmp.lt.s32.totalorder %s21, 1
          %s685 = scalar_select %p684, %s21, 1
          %p686 = scmp.lt.s32.totalorder %s22, 0
          %s687 = scalar_select %p686, %s22, 0
          %s688 = smul.addr %s687, 4
          %s689 = smul.addr %s685, 4
          %s690 = sadd.s32 %s688, %s689
          %s691 = smul.addr %s690, 8
          %s692 = scalar_lea.vmem %s4, %s691
        $region130: #{tdnn_layer_forward.2} parent=125 // pred_fallthru
          _
      $region126: #{tdnn_layer_forward.2} parent=5 // pred_fallthru
        _
    $region6: #{tdnn_layer_forward.2} parent=1 // loop_footer
      %s14 = sadd.s32 1, %s10
    $region7: #{tdnn_layer_forward.2} parent=1 // loop_footer_branch
      %9 = sbr.rel target = $region3
    $region8: #{tdnn_layer_forward.2} parent=1 // loop_exit
      _

// kernel: tdnn_layer_forward.3
$region0: #{tdnn_layer_forward.3}
  #allocation0 [shape = 'u32[]', space=smem, size = 0x4, offset = 0x4, fixed_abs, tag = 'smem constant byte address 0x4 - core index']
  #allocation1 [shape = 'u32[144,128]{1,0:T(1,128)}', space=vmem, size = 0x12000, scoped, tag = 'internal scratch']
  %s0 = inlined_call_operand.vmem [shape: bf16[2,16,256], index: 0, kind: input, shape index: {}, may-alias: {0,1}]
  %s1 = inlined_call_operand.vmem [shape: bf16[2,16,256], index: 1, kind: input, shape index: {}, may-alias: {0,1}]
  %s2 = inlined_call_operand.vmem [shape: bf16[3,32,16], index: 2, kind: input, shape index: {}]
  %s3 = inlined_call_operand.vmem [shape: f32[32,1], index: 3, kind: input, shape index: {}]
  %s4 = inlined_call_operand.vmem [shape: f32[32,2], index: 4, kind: input, shape index: {}]
  %s5 = inlined_call_operand.vmem [shape: f32[2,32,30], index: 5, kind: output, shape index: {}]
  %s6 = sld [smem:[#allocation0]]
  $region135: #{tdnn_layer_forward.3} parent=0
    _
  %s8 = ssub.s32 1, %s6
  %s9 = scalar_select 0, %s8, %s6
  $region1: #{tdnn_layer_forward.3} parent=0
    #allocation2 [shape = 'u8[8192]{0}', space=vmem, size = 0x2000, scoped, tag = 'input window, operand 0']
    #allocation3 [shape = 'u8[8192]{0}', space=vmem, size = 0x2000, scoped, tag = 'input window, operand 1']
    loop: start=0, step=1, limit=4
    $region2: #{tdnn_layer_forward.3} parent=1 // loop_pre_header
      _
    $region3: #{tdnn_layer_forward.3} parent=1 // loop_header
      %s11 = sphi 0, %s15
      %p12 = scmp.ge.s32.totalorder %s11, 4
      %s18 = sphi 0, %s30
      %s19 = sphi 0, %s26
      %s20 = sphi 0, %s18
      %s21 = sphi 0, %s19
      %s22 = sphi 0, %s20
      %s23 = sphi 0, %s21
      %s35 = sphi 0, %s37
      %s38 = sphi 0, %s35
      %s39 = sphi 0, %s38
      %s55 = sphi 0, %s39
      %s65 = sphi 0, %s67
      %s68 = sphi 0, %s65
      %s69 = sphi 0, %s68
      %s85 = sphi 0, %s69
      %s89 = sphi 0, %s89
      %s91 = sphi 0, %s89
      %s92 = sphi 0, %s91
      %s106 = sphi 0, %s92
      %s110 = sphi 0, %s110
      %s112 = sphi 0, %s110
      %s113 = sphi 0, %s112
      %s127 = sphi 0, %s113
      %s131 = sphi 0, %s131
      %s133 = sphi 0, %s131
      %s134 = sphi 0, %s133
      %s148 = sphi 0, %s134
      %s156 = sphi 0, %s158
      %s159 = sphi 0, %s156
      %s160 = sphi 0, %s159
      %s176 = sphi 0, %s160
    $region4: #{tdnn_layer_forward.3} parent=1 // loop_header_branch
      %14 = sbr.rel (%p12) target = $region8
    $region5: #{tdnn_layer_forward.3} parent=1 // loop_body
      %s16 = ssub.s32 %s11, 1
      %s17 = ssub.s32 %s11, 2
      %s24 = sadd.s32 1, %s19
      %p25 = scmp.ge.s32.totalorder %s24, 1
      %s26 = scalar_select %p25, 0, %s24
      %s27 = sadd.s32 1, %s18
      %s28 = scalar_select %p25, %s27, %s18
      %p29 = scmp.ge.s32.totalorder %s28, 2
      %s30 = scalar_select %p29, 0, %s28
      %s31 = ssub.s32 %s18, %s30
      %s32 = ssub.s32 %s19, %s26
      %s33 = sor.u32 %s31, %s32
      %p34 = scmp.eq.s32.totalorder %s33, 0
      %s36 = sadd.s32 %s35, 1
      %s37 = scalar_select %p34, %s35, %s36
      %p40 = pneg %p34
      %p41 = scmp.eq.s32.totalorder %s11, 1
      %p42 = por %p40, %p41
      %p43 = scmp.ne.s32.totalorder %s35, %s38
      %p44 = scmp.eq.s32.totalorder %s11, 0
      %p45 = por %p43, %p44
      %p46 = scmp.ne.s32.totalorder %s35, %s38
      %p47 = scmp.eq.s32.totalorder %s16, 1
      %p48 = por %p46, %p47
      %p49 = scmp.ne.s32.totalorder %s38, %s39
      %p50 = scmp.eq.s32.totalorder %s16, 0
      %p51 = por %p49, %p50
      %p52 = scmp.ne.s32.totalorder %s38, %s39
      %p53 = scmp.eq.s32.totalorder %s17, 1
      %p54 = por %p52, %p53
      %p56 = scmp.ne.s32.totalorder %s39, %s55
      %p57 = scmp.eq.s32.totalorder %s17, 0
      %p58 = por %p56, %p57
      %s59 = sadd.s32 %s19, 1
      %s60 = sadd.s32 %s26, 1
      %s61 = ssub.s32 %s18, %s30
      %s62 = ssub.s32 %s59, %s60
      %s63 = sor.u32 %s61, %s62
      %p64 = scmp.eq.s32.totalorder %s63, 0
      %s66 = sadd.s32 %s65, 1
      %s67 = scalar_select %p64, %s65, %s66
      %p70 = pneg %p64
      %p71 = scmp.eq.s32.totalorder %s11, 1
      %p72 = por %p70, %p71
      %p73 = scmp.ne.s32.totalorder %s65, %s68
      %p74 = scmp.eq.s32.totalorder %s11, 0
      %p75 = por %p73, %p74
      %p76 = scmp.ne.s32.totalorder %s65, %s68
      %p77 = scmp.eq.s32.totalorder %s16, 1
      %p78 = por %p76, %p77
      %p79 = scmp.ne.s32.totalorder %s68, %s69
      %p80 = scmp.eq.s32.totalorder %s16, 0
      %p81 = por %p79, %p80
      %p82 = scmp.ne.s32.totalorder %s68, %s69
      %p83 = scmp.eq.s32.totalorder %s17, 1
      %p84 = por %p82, %p83
      %p86 = scmp.ne.s32.totalorder %s69, %s85
      %p87 = scmp.eq.s32.totalorder %s17, 0
      %p88 = por %p86, %p87
      %s90 = sadd.s32 %s89, 1
      %p93 = scmp.eq.s32.totalorder %s11, 1
      %p94 = scmp.ne.s32.totalorder %s89, %s91
      %p95 = scmp.eq.s32.totalorder %s11, 0
      %p96 = por %p94, %p95
      %p97 = scmp.ne.s32.totalorder %s89, %s91
      %p98 = scmp.eq.s32.totalorder %s16, 1
      %p99 = por %p97, %p98
      %p100 = scmp.ne.s32.totalorder %s91, %s92
      %p101 = scmp.eq.s32.totalorder %s16, 0
      %p102 = por %p100, %p101
      %p103 = scmp.ne.s32.totalorder %s91, %s92
      %p104 = scmp.eq.s32.totalorder %s17, 1
      %p105 = por %p103, %p104
      %p107 = scmp.ne.s32.totalorder %s92, %s106
      %p108 = scmp.eq.s32.totalorder %s17, 0
      %p109 = por %p107, %p108
      %s111 = sadd.s32 %s110, 1
      %p114 = scmp.eq.s32.totalorder %s11, 1
      %p115 = scmp.ne.s32.totalorder %s110, %s112
      %p116 = scmp.eq.s32.totalorder %s11, 0
      %p117 = por %p115, %p116
      %p118 = scmp.ne.s32.totalorder %s110, %s112
      %p119 = scmp.eq.s32.totalorder %s16, 1
      %p120 = por %p118, %p119
      %p121 = scmp.ne.s32.totalorder %s112, %s113
      %p122 = scmp.eq.s32.totalorder %s16, 0
      %p123 = por %p121, %p122
      %p124 = scmp.ne.s32.totalorder %s112, %s113
      %p125 = scmp.eq.s32.totalorder %s17, 1
      %p126 = por %p124, %p125
      %p128 = scmp.ne.s32.totalorder %s113, %s127
      %p129 = scmp.eq.s32.totalorder %s17, 0
      %p130 = por %p128, %p129
      %s132 = sadd.s32 %s131, 1
      %p135 = scmp.eq.s32.totalorder %s11, 1
      %p136 = scmp.ne.s32.totalorder %s131, %s133
      %p137 = scmp.eq.s32.totalorder %s11, 0
      %p138 = por %p136, %p137
      %p139 = scmp.ne.s32.totalorder %s131, %s133
      %p140 = scmp.eq.s32.totalorder %s16, 1
      %p141 = por %p139, %p140
      %p142 = scmp.ne.s32.totalorder %s133, %s134
      %p143 = scmp.eq.s32.totalorder %s16, 0
      %p144 = por %p142, %p143
      %p145 = scmp.ne.s32.totalorder %s133, %s134
      %p146 = scmp.eq.s32.totalorder %s17, 1
      %p147 = por %p145, %p146
      %p149 = scmp.ne.s32.totalorder %s134, %s148
      %p150 = scmp.eq.s32.totalorder %s17, 0
      %p151 = por %p149, %p150
      %s152 = ssub.s32 %s18, %s30
      %s153 = ssub.s32 %s19, %s26
      %s154 = sor.u32 %s152, %s153
      %p155 = scmp.eq.s32.totalorder %s154, 0
      %s157 = sadd.s32 %s156, 1
      %s158 = scalar_select %p155, %s156, %s157
      %p161 = pneg %p155
      %p162 = scmp.eq.s32.totalorder %s11, 1
      %p163 = por %p161, %p162
      %p164 = scmp.ne.s32.totalorder %s156, %s159
      %p165 = scmp.eq.s32.totalorder %s11, 0
      %p166 = por %p164, %p165
      %p167 = scmp.ne.s32.totalorder %s156, %s159
      %p168 = scmp.eq.s32.totalorder %s16, 1
      %p169 = por %p167, %p168
      %p170 = scmp.ne.s32.totalorder %s159, %s160
      %p171 = scmp.eq.s32.totalorder %s16, 0
      %p172 = por %p170, %p171
      %p173 = scmp.ne.s32.totalorder %s159, %s160
      %p174 = scmp.eq.s32.totalorder %s17, 1
      %p175 = por %p173, %p174
      %p177 = scmp.ne.s32.totalorder %s160, %s176
      %p178 = scmp.eq.s32.totalorder %s17, 0
      %p179 = por %p177, %p178
      %p180 = scmp.le.s32.totalorder 1, %s11
      %p181 = scmp.lt.s32.totalorder %s11, 3
      %p182 = pnand %p180, %p181
      %p183 = pneg %p182
      // Predicated region
      $region9: #{tdnn_layer_forward.3} parent=5 // pred_check
        _
      $region10: #{tdnn_layer_forward.3} parent=5 // pred_check_branch
        %185 = sbr.rel (%p182) target = $region12
      $region11: #{tdnn_layer_forward.3} parent=5 // pred_region
        %s186 = ssub.s32 %s11, 1
        // Predicated region
        $region13: #{tdnn_layer_forward.3} parent=11 // pred_check
          %p187 = pneg %p102
        $region14: #{tdnn_layer_forward.3} parent=11 // pred_check_branch
          %189 = sbr.rel (%p187) target = $region16
        $region15: #{tdnn_layer_forward.3} parent=11 // pred_region
          _
        $region16: #{tdnn_layer_forward.3} parent=11 // pred_fallthru
          _
        // Predicated region
        $region17: #{tdnn_layer_forward.3} parent=11 // pred_check
          %p190 = pneg %p123
        $region18: #{tdnn_layer_forward.3} parent=11 // pred_check_branch
          %192 = sbr.rel (%p190) target = $region20
        $region19: #{tdnn_layer_forward.3} parent=11 // pred_region
          _
        $region20: #{tdnn_layer_forward.3} parent=11 // pred_fallthru
          _
        // Predicated region
        $region21: #{tdnn_layer_forward.3} parent=11 // pred_check
          %p193 = pneg %p144
        $region22: #{tdnn_layer_forward.3} parent=11 // pred_check_branch
          %195 = sbr.rel (%p193) target = $region24
        $region23: #{tdnn_layer_forward.3} parent=11 // pred_region
          _
        $region24: #{tdnn_layer_forward.3} parent=11 // pred_fallthru
          _
      $region12: #{tdnn_layer_forward.3} parent=5 // pred_fallthru
        _
      %p196 = scmp.lt.s32.totalorder %s11, 2
      // Predicated region
      $region25: #{tdnn_layer_forward.3} parent=5 // pred_check
        %p197 = pneg %p196
      $region26: #{tdnn_layer_forward.3} parent=5 // pred_check_branch
        %199 = sbr.rel (%p197) target = $region28
      $region27: #{tdnn_layer_forward.3} parent=5 // pred_region
        // Predicated region
        $region29: #{tdnn_layer_forward.3} parent=27 // pred_check
          %p200 = pneg %p45
        $region30: #{tdnn_layer_forward.3} parent=27 // pred_check_branch
          %202 = sbr.rel (%p200) target = $region32
        $region31: #{tdnn_layer_forward.3} parent=27 // pred_region
          %s203 = sand.u32 %s35, 1
          %s204 = sand.u32 %s35, 1
          %s205 = smul.addr %s204, 8
          %s206 = scalar_lea.vmem [#allocation2], %s205
          %s207 = smul.addr %s18, 4
          %s208 = sadd.s32 %s19, %s207
          %s209 = smul.addr %s208, 4
          %s210 = scalar_lea.vmem %s0, %s209
          // Predicated region
          $region33: #{tdnn_layer_forward.3} parent=31 // pred_check
            _
          $region34: #{tdnn_layer_forward.3} parent=31 // pred_check_branch
            %212 = sbr.rel (0) target = $region36
          $region35: #{tdnn_layer_forward.3} parent=31 // pred_region
            // Predicated region
            $region37: #{tdnn_layer_forward.3} parent=35 // pred_check
              _
            $region38: #{tdnn_layer_forward.3} parent=35 // pred_check_branch
              %214 = sbr.rel target = $region40
            $region39: #{tdnn_layer_forward.3} parent=35 // pred_region
              // Predicated region
              $region52: #{tdnn_layer_forward.3} parent=39 // pred_check
                _
              $region53: #{tdnn_layer_forward.3} parent=39 // pred_check_branch
                %231 = sbr.rel (0) target = $region55
              $region54: #{tdnn_layer_forward.3} parent=39 // pred_region
                loop: start=0, step=1, limit=1
                $region56: #{tdnn_layer_forward.3} parent=54 // loop_pre_header
                  _
                $region57: #{tdnn_layer_forward.3} parent=54 // loop_header
                  %s233 = sphi 0, %s237
                  %p234 = scmp.ge.s32.totalorder %s233, 1
                  %s238 = sphi %s210, %s210
                  %s239 = sphi %s206, %s206
                $region58: #{tdnn_layer_forward.3} parent=54 // loop_header_branch
                  %236 = sbr.rel (%p234) target = $region62
                $region59: #{tdnn_layer_forward.3} parent=54 // loop_body
                  _
                $region60: #{tdnn_layer_forward.3} parent=54 // loop_footer
                  %s237 = sadd.s32 1, %s233
                $region61: #{tdnn_layer_forward.3} parent=54 // loop_footer_branch
                  %232 = sbr.rel target = $region57
                $region62: #{tdnn_layer_forward.3} parent=54 // loop_exit
                  _
                loop: start=0, step=1, limit=1
                $region63: #{tdnn_layer_forward.3} parent=54 // loop_pre_header
                  _
                $region64: #{tdnn_layer_forward.3} parent=54 // loop_header
                  %s242 = sphi 0, %s246
                  %p243 = scmp.ge.s32.totalorder %s242, 1
                  %s247 = sphi %s210, %s210
                  %s248 = sphi %s206, %s206
                $region65: #{tdnn_layer_forward.3} parent=54 // loop_header_branch
                  %245 = sbr.rel (%p243) target = $region69
                $region66: #{tdnn_layer_forward.3} parent=54 // loop_body
                  %v249 = vld [vmem:[%s247] sm:$0xf]
                  %250 = vst [vmem:[%s248] sm:$0xf] %v249
                  %v251 = vld [vmem:[%s247 + $0x8] sm:$0xf]
                  %252 = vst [vmem:[%s248 + $0x4] sm:$0xf] %v251
                $region67: #{tdnn_layer_forward.3} parent=54 // loop_footer
                  %s246 = sadd.s32 1, %s242
                $region68: #{tdnn_layer_forward.3} parent=54 // loop_footer_branch
                  %241 = sbr.rel target = $region64
                $region69: #{tdnn_layer_forward.3} parent=54 // loop_exit
                  _
              $region55: #{tdnn_layer_forward.3} parent=39 // pred_fallthru
                _
            $region40: #{tdnn_layer_forward.3} parent=35 // pred_fallthru
              _
            // Predicated region
            $region41: #{tdnn_layer_forward.3} parent=35 // pred_check
              _
            $region42: #{tdnn_layer_forward.3} parent=35 // pred_check_branch
              %216 = sbr.rel (0) target = $region44
            $region43: #{tdnn_layer_forward.3} parent=35 // pred_region
              loop: start=0, step=1, limit=1
              $region45: #{tdnn_layer_forward.3} parent=43 // loop_pre_header
                _
              $region46: #{tdnn_layer_forward.3} parent=43 // loop_header
                %s219 = sphi 0, %s223
                %p220 = scmp.ge.s32.totalorder %s219, 1
                %s224 = sphi %s210, %s210
                %s225 = sphi %s206, %s206
              $region47: #{tdnn_layer_forward.3} parent=43 // loop_header_branch
                %222 = sbr.rel (%p220) target = $region51
              $region48: #{tdnn_layer_forward.3} parent=43 // loop_body
                %v226 = vld [vmem:[%s224] sm:$0xf]
                %227 = vst [vmem:[%s225] sm:$0xf] %v226
                %v228 = vld [vmem:[%s224 + $0x8] sm:$0xf]
                %229 = vst [vmem:[%s225 + $0x4] sm:$0xf] %v228
              $region49: #{tdnn_layer_forward.3} parent=43 // loop_footer
                %s223 = sadd.s32 1, %s219
              $region50: #{tdnn_layer_forward.3} parent=43 // loop_footer_branch
                %218 = sbr.rel target = $region46
              $region51: #{tdnn_layer_forward.3} parent=43 // loop_exit
                _
            $region44: #{tdnn_layer_forward.3} parent=35 // pred_fallthru
              _
          $region36: #{tdnn_layer_forward.3} parent=31 // pred_fallthru
            _
          %253 = vnop
        $region32: #{tdnn_layer_forward.3} parent=27 // pred_fallthru
          _
        // Predicated region
        $region70: #{tdnn_layer_forward.3} parent=27 // pred_check
          %p254 = pneg %p75
        $region71: #{tdnn_layer_forward.3} parent=27 // pred_check_branch
          %256 = sbr.rel (%p254) target = $region73
        $region72: #{tdnn_layer_forward.3} parent=27 // pred_region
          %s257 = sand.u32 %s65, 1
          %s258 = sand.u32 %s65, 1
          %s259 = smul.addr %s258, 8
          %s260 = scalar_lea.vmem [#allocation3], %s259
          %s261 = sadd.s32 %s19, 1
          %s262 = smul.addr %s18, 4
          %s263 = sadd.s32 %s261, %s262
          %s264 = smul.addr %s263, 4
          %s265 = scalar_lea.vmem %s1, %s264
          // Predicated region
          $region74: #{tdnn_layer_forward.3} parent=72 // pred_check
            _
          $region75: #{tdnn_layer_forward.3} parent=72 // pred_check_branch
            %267 = sbr.rel (0) target = $region77
          $region76: #{tdnn_layer_forward.3} parent=72 // pred_region
            // Predicated region
            $region78: #{tdnn_layer_forward.3} parent=76 // pred_check
              _
            $region79: #{tdnn_layer_forward.3} parent=76 // pred_check_branch
              %269 = sbr.rel target = $region81
            $region80: #{tdnn_layer_forward.3} parent=76 // pred_region
              // Predicated region
              $region93: #{tdnn_layer_forward.3} parent=80 // pred_check
                _
              $region94: #{tdnn_layer_forward.3} parent=80 // pred_check_branch
                %286 = sbr.rel (0) target = $region96
              $region95: #{tdnn_layer_forward.3} parent=80 // pred_region
                loop: start=0, step=1, limit=1
                $region97: #{tdnn_layer_forward.3} parent=95 // loop_pre_header
                  _
                $region98: #{tdnn_layer_forward.3} parent=95 // loop_header
                  %s288 = sphi 0, %s292
                  %p289 = scmp.ge.s32.totalorder %s288, 1
                  %s293 = sphi %s265, %s265
                  %s294 = sphi %s260, %s260
                $region99: #{tdnn_layer_forward.3} parent=95 // loop_header_branch
                  %291 = sbr.rel (%p289) target = $region103
                $region100: #{tdnn_layer_forward.3} parent=95 // loop_body
                  _
                $region101: #{tdnn_layer_forward.3} parent=95 // loop_footer
                  %s292 = sadd.s32 1, %s288
                $region102: #{tdnn_layer_forward.3} parent=95 // loop_footer_branch
                  %287 = sbr.rel target = $region98
                $region103: #{tdnn_layer_forward.3} parent=95 // loop_exit
                  _
                loop: start=0, step=1, limit=1
                $region104: #{tdnn_layer_forward.3} parent=95 // loop_pre_header
                  _
                $region105: #{tdnn_layer_forward.3} parent=95 // loop_header
                  %s297 = sphi 0, %s301
                  %p298 = scmp.ge.s32.totalorder %s297, 1
                  %s302 = sphi %s265, %s265
                  %s303 = sphi %s260, %s260
                $region106: #{tdnn_layer_forward.3} parent=95 // loop_header_branch
                  %300 = sbr.rel (%p298) target = $region110
                $region107: #{tdnn_layer_forward.3} parent=95 // loop_body
                  %v304 = vld [vmem:[%s302] sm:$0xf]
                  %305 = vst [vmem:[%s303] sm:$0xf] %v304
                  %v306 = vld [vmem:[%s302 + $0x8] sm:$0xf]
                  %307 = vst [vmem:[%s303 + $0x4] sm:$0xf] %v306
                $region108: #{tdnn_layer_forward.3} parent=95 // loop_footer
                  %s301 = sadd.s32 1, %s297
                $region109: #{tdnn_layer_forward.3} parent=95 // loop_footer_branch
                  %296 = sbr.rel target = $region105
                $region110: #{tdnn_layer_forward.3} parent=95 // loop_exit
                  _
              $region96: #{tdnn_layer_forward.3} parent=80 // pred_fallthru
                _
            $region81: #{tdnn_layer_forward.3} parent=76 // pred_fallthru
              _
            // Predicated region
            $region82: #{tdnn_layer_forward.3} parent=76 // pred_check
              _
            $region83: #{tdnn_layer_forward.3} parent=76 // pred_check_branch
              %271 = sbr.rel (0) target = $region85
            $region84: #{tdnn_layer_forward.3} parent=76 // pred_region
              loop: start=0, step=1, limit=1
              $region86: #{tdnn_layer_forward.3} parent=84 // loop_pre_header
                _
              $region87: #{tdnn_layer_forward.3} parent=84 // loop_header
                %s274 = sphi 0, %s278
                %p275 = scmp.ge.s32.totalorder %s274, 1
                %s279 = sphi %s265, %s265
                %s280 = sphi %s260, %s260
              $region88: #{tdnn_layer_forward.3} parent=84 // loop_header_branch
                %277 = sbr.rel (%p275) target = $region92
              $region89: #{tdnn_layer_forward.3} parent=84 // loop_body
                %v281 = vld [vmem:[%s279] sm:$0xf]
                %282 = vst [vmem:[%s280] sm:$0xf] %v281
                %v283 = vld [vmem:[%s279 + $0x8] sm:$0xf]
                %284 = vst [vmem:[%s280 + $0x4] sm:$0xf] %v283
              $region90: #{tdnn_layer_forward.3} parent=84 // loop_footer
                %s278 = sadd.s32 1, %s274
              $region91: #{tdnn_layer_forward.3} parent=84 // loop_footer_branch
                %273 = sbr.rel target = $region87
              $region92: #{tdnn_layer_forward.3} parent=84 // loop_exit
                _
            $region85: #{tdnn_layer_forward.3} parent=76 // pred_fallthru
              _
          $region77: #{tdnn_layer_forward.3} parent=72 // pred_fallthru
            _
          %308 = vnop
        $region73: #{tdnn_layer_forward.3} parent=27 // pred_fallthru
          _
      $region28: #{tdnn_layer_forward.3} parent=5 // pred_fallthru
        _
      %p309 = scmp.le.s32.totalorder 1, %s11
      %p310 = scmp.lt.s32.totalorder %s11, 3
      %p311 = pnand %p309, %p310
      %p312 = pneg %p311
      // Predicated region
      $region111: #{tdnn_layer_forward.3} parent=5 // pred_check
        _
      $region112: #{tdnn_layer_forward.3} parent=5 // pred_check_branch
        %314 = sbr.rel (%p311) target = $region114
      $region113: #{tdnn_layer_forward.3} parent=5 // pred_region
        %s315 = ssub.s32 %s11, 1
        %s316 = sand.u32 %s38, 1
        %s317 = sand.u32 %s38, 1
        %s318 = smul.addr %s317, 8
        %s319 = scalar_lea.vmem [#allocation2], %s318
        // Predicated region
        $region115: #{tdnn_layer_forward.3} parent=113 // pred_check
          %p320 = pneg %p51
        $region116: #{tdnn_layer_forward.3} parent=113 // pred_check_branch
          %322 = sbr.rel (%p320) target = $region118
        $region117: #{tdnn_layer_forward.3} parent=113 // pred_region
          _
        $region118: #{tdnn_layer_forward.3} parent=113 // pred_fallthru
          _
        %s323 = sand.u32 %s68, 1
        %s324 = sand.u32 %s68, 1
        %s325 = smul.addr %s324, 8
        %s326 = scalar_lea.vmem [#allocation3], %s325
        // Predicated region
        $region119: #{tdnn_layer_forward.3} parent=113 // pred_check
          %p327 = pneg %p81
        $region120: #{tdnn_layer_forward.3} parent=113 // pred_check_branch
          %329 = sbr.rel (%p327) target = $region122
        $region121: #{tdnn_layer_forward.3} parent=113 // pred_region
          _
        $region122: #{tdnn_layer_forward.3} parent=113 // pred_fallthru
          _
        %s330 = sand.u32 %s38, 1
        %s331 = sand.u32 %s38, 1
        %s332 = smul.addr %s331, 8
        %s333 = scalar_lea.vmem [#allocation2], %s332
        %p334 = pneg %p51
        %p335 = pneg %p48
        %s336 = sand.u32 %s68, 1
        %s337 = sand.u32 %s68, 1
        %s338 = smul.addr %s337, 8
        %s339 = scalar_lea.vmem [#allocation3], %s338
        %p340 = pneg %p81
        %p341 = pneg %p78
        %p342 = pneg %p102
        %p343 = pneg %p99
        %p344 = pneg %p123
        %p345 = pneg %p120
        %p346 = pneg %p144
        %p347 = pneg %p141
        %p348 = pneg %p172
        %p349 = pneg %p169
        %p350 = scmp.lt.s32.totalorder %s20, 1
        %s351 = scalar_select %p350, %s20, 1
        %p352 = scmp.lt.s32.totalorder %s21, 0
        %s353 = scalar_select %p352, %s21, 0
        %s354 = smul.addr %s351, 4
        %s355 = sadd.s32 %s353, %s354
        %s356 = smul.addr %s355, 8
        %s357 = scalar_lea.vmem %s5, %s356
        %s358 = sadd.s32 %s21, 1
        %p359 = scmp.lt.s32.totalorder %s20, 1
        %s360 = scalar_select %p359, %s20, 1
        %p361 = scmp.lt.s32.totalorder %s21, 0
        %s362 = scalar_select %p361, %s21, 0
        %s363 = smul.addr %s360, 4
        %s364 = sadd.s32 %s362, %s363
        %s365 = smul.addr %s364, 8
        %s366 = scalar_lea.vmem %s5, %s365
        %v368 = vld [vmem:[%s319] sm:$0xf]
        %v369 = vld [vmem:[%s319 + $0x4] sm:$0xf]
        %v370 = vld [vmem:[%s2] sm:$0xf]
        %v371 = vld [vmem:[%s2 + $0x4] sm:$0xf]
        %v372 = vld [vmem:[%s2 + $0x8] sm:$0xf]
        %v373 = vld [vmem:[%s2 + $0xc] sm:$0xf]
        %v374 = vld [vmem:[%s326] sm:$0xf]
        %v375 = vld [vmem:[%s326 + $0x4] sm:$0xf]
        %v378 = vunpack.c.l.b16 %v368
        %v379 = vunpack.c.l.b16 %v369
        %v380 = vpack.c.b16 %v379, %v378
        %381 = vrot.lane.b32.xlu0 %v380, 126
        %v382 = vpop.permute.xlu0 %381
        %v385 = vunpack.c.l.b16 %v374
        %v386 = vunpack.c.l.b16 %v375
        %v387 = vpack.c.b16 %v386, %v385
        %388 = vrot.lane.b32.xlu0 %v387, 126
        %v389 = vpop.permute.xlu0 %388
        %vm390 = vcmask 1031168
        %v393 = vsel %vm390, %v382, %v389
        %s395 = scalar_lea.vmem %s2, 16
        %v396 = vld [vmem:[%s395] sm:$0xf]
        %v397 = vld [vmem:[%s395 + $0x4] sm:$0xf]
        %v398 = vld [vmem:[%s395 + $0x8] sm:$0xf]
        %v399 = vld [vmem:[%s395 + $0xc] sm:$0xf]
        %v404 = vunpack.c.l.b16 %v396
        %v405 = vunpack.c.l.b16 %v397
        %v406 = vunpack.c.l.b16 %v398
        %v407 = vunpack.c.l.b16 %v399
        %v408 = vpack.c.b16 %v405, %v404
        %v409 = vpack.c.b16 %v407, %v406
        %vm410 = vcmask 130048
        %v412 = vsel %vm410, %v408, 0
        %v415 = vsel %vm410, %v409, 0
        %417 = vmatprep.subr.bf16.mxu0 0
        %418 = vmatpush1.bf16.msra.mxu0 %v393
        %419 = vmatprep.subr.bf16.mxu0 0
        %420 = vmatpush1.bf16.msra.mxu0 0
        %421 = vmatprep.subr.bf16.mxu0 0
        %422 = vmatpush1.bf16.msra.mxu0 0
        %423 = vmatprep.subr.bf16.mxu0 0
        %424 = vmatpush1.bf16.msra.mxu0 0
        %425 = vmatprep.subr.bf16.mxu0 0
        %426 = vmatpush1.bf16.msra.mxu0 0
        %427 = vmatprep.subr.bf16.mxu0 0
        %428 = vmatpush1.bf16.msra.mxu0 0
        %429 = vmatprep.subr.bf16.mxu0 0
        %430 = vmatpush1.bf16.msra.mxu0 0
        %431 = vmatprep.subr.bf16.mxu0 0
        %432 = vmatpush1.bf16.msra.mxu0 0
        %433 = vmatprep.subr.bf16.mxu0 0
        %434 = vmatpush1.bf16.msra.mxu0 0
        %435 = vmatprep.subr.bf16.mxu0 0
        %436 = vmatpush1.bf16.msra.mxu0 0
        %437 = vmatprep.subr.bf16.mxu0 0
        %438 = vmatpush1.bf16.msra.mxu0 0
        %439 = vmatprep.subr.bf16.mxu0 0
        %440 = vmatpush1.bf16.msra.mxu0 0
        %441 = vmatprep.subr.bf16.mxu0 0
        %442 = vmatpush1.bf16.msra.mxu0 0
        %443 = vmatprep.subr.bf16.mxu0 0
        %444 = vmatpush1.bf16.msra.mxu0 0
        %445 = vmatprep.subr.bf16.mxu0 0
        %446 = vmatpush1.bf16.msra.mxu0 0
        %447 = vmatprep.subr.bf16.mxu0 0
        %448 = vmatpush1.bf16.msra.mxu0 0
        %449 = vmatprep.mubr.bf16.mxu0 0
        %450 = vmatmul.mubr.bf16.gmra.mrb[0].mxu0 %v412
        %v451 = vpop.f32.mrb[0].mxu0
        %v452 = vadd.f32 0.0, %v451
        %v453 = vpop.f32.mrb[0].mxu0
        %v454 = vpop.f32.mrb[0].mxu0
        %v455 = vadd.f32 0.0, %v454
        %v456 = vpop.f32.mrb[0].mxu0
        %457 = vmatprep.mubr.bf16.mxu0 0
        %458 = vmatmul.mubr.bf16.gmra.mrb[0].mxu0 %v415
        %v459 = vpop.f32.mrb[0].mxu0
        %v460 = vadd.f32 0.0, %v459
        %v461 = vpop.f32.mrb[0].mxu0
        %v462 = vpop.f32.mrb[0].mxu0
        %v463 = vadd.f32 0.0, %v462
        %v464 = vpop.f32.mrb[0].mxu0
        %465 = vdwg.mxu0
        %v470 = vunpack.c.l.b16 %v370
        %v471 = vunpack.c.l.b16 %v371
        %v472 = vunpack.c.l.b16 %v372
        %v473 = vunpack.c.l.b16 %v373
        %v474 = vpack.c.b16 %v471, %v470
        %v475 = vpack.c.b16 %v473, %v472
        %v478 = vsel %vm410, %v474, 0
        %v481 = vsel %vm410, %v475, 0
        %483 = vmatprep.subr.bf16.mxu0 0
        %484 = vmatpush1.bf16.msra.mxu0 %v380
        %485 = vmatprep.subr.bf16.mxu0 0
        %486 = vmatpush1.bf16.msra.mxu0 0
        %487 = vmatprep.subr.bf16.mxu0 0
        %488 = vmatpush1.bf16.msra.mxu0 0
        %489 = vmatprep.subr.bf16.mxu0 0
        %490 = vmatpush1.bf16.msra.mxu0 0
        %491 = vmatprep.subr.bf16.mxu0 0
        %492 = vmatpush1.bf16.msra.mxu0 0
        %493 = vmatprep.subr.bf16.mxu0 0
        %494 = vmatpush1.bf16.msra.mxu0 0
        %495 = vmatprep.subr.bf16.mxu0 0
        %496 = vmatpush1.bf16.msra.mxu0 0
        %497 = vmatprep.subr.bf16.mxu0 0
        %498 = vmatpush1.bf16.msra.mxu0 0
        %499 = vmatprep.subr.bf16.mxu0 0
        %500 = vmatpush1.bf16.msra.mxu0 0
        %501 = vmatprep.subr.bf16.mxu0 0
        %502 = vmatpush1.bf16.msra.mxu0 0
        %503 = vmatprep.subr.bf16.mxu0 0
        %504 = vmatpush1.bf16.msra.mxu0 0
        %505 = vmatprep.subr.bf16.mxu0 0
        %506 = vmatpush1.bf16.msra.mxu0 0
        %507 = vmatprep.subr.bf16.mxu0 0
        %508 = vmatpush1.bf16.msra.mxu0 0
        %509 = vmatprep.subr.bf16.mxu0 0
        %510 = vmatpush1.bf16.msra.mxu0 0
        %511 = vmatprep.subr.bf16.mxu0 0
        %512 = vmatpush1.bf16.msra.mxu0 0
        %513 = vmatprep.subr.bf16.mxu0 0
        %514 = vmatpush1.bf16.msra.mxu0 0
        %515 = vmatprep.mubr.bf16.mxu0 0
        %516 = vmatmul.mubr.bf16.gmra.mrb[0].mxu0 %v478
        %v517 = vpop.f32.mrb[0].mxu0
        %v518 = vadd.f32 %v452, %v517
        %v519 = vpop.f32.mrb[0].mxu0
        %v520 = vpop.f32.mrb[0].mxu0
        %v521 = vadd.f32 %v455, %v520
        %v522 = vpop.f32.mrb[0].mxu0
        %523 = vmatprep.mubr.bf16.mxu0 0
        %524 = vmatmul.mubr.bf16.gmra.mrb[0].mxu0 %v481
        %v525 = vpop.f32.mrb[0].mxu0
        %v526 = vadd.f32 %v460, %v525
        %v527 = vpop.f32.mrb[0].mxu0
        %v528 = vpop.f32.mrb[0].mxu0
        %v529 = vadd.f32 %v463, %v528
        %v530 = vpop.f32.mrb[0].mxu0
        %531 = vdwg.mxu0
        %532 = vrot.lane.b32.xlu0 %v380, 124
        %v533 = vpop.permute.xlu0 %532
        %534 = vrot.lane.b32.xlu0 %v387, 124
        %v535 = vpop.permute.xlu0 %534
        %vm536 = vcmask 1014784
        %v539 = vsel %vm536, %v533, %v535
        %s541 = scalar_lea.vmem %s2, 32
        %v542 = vld [vmem:[%s541] sm:$0xf]
        %v543 = vld [vmem:[%s541 + $0x4] sm:$0xf]
        %v544 = vld [vmem:[%s541 + $0x8] sm:$0xf]
        %v545 = vld [vmem:[%s541 + $0xc] sm:$0xf]
        %v550 = vunpack.c.l.b16 %v542
        %v551 = vunpack.c.l.b16 %v543
        %v552 = vunpack.c.l.b16 %v544
        %v553 = vunpack.c.l.b16 %v545
        %v554 = vpack.c.b16 %v551, %v550
        %v555 = vpack.c.b16 %v553, %v552
        %v557 = vsel %vm410, %v554, 0
        %v560 = vsel %vm410, %v555, 0
        %562 = vmatprep.subr.bf16.mxu0 0
        %563 = vmatpush1.bf16.msra.mxu0 %v539
        %564 = vmatprep.subr.bf16.mxu0 0
        %565 = vmatpush1.bf16.msra.mxu0 0
        %566 = vmatprep.subr.bf16.mxu0 0
        %567 = vmatpush1.bf16.msra.mxu0 0
        %568 = vmatprep.subr.bf16.mxu0 0
        %569 = vmatpush1.bf16.msra.mxu0 0
        %570 = vmatprep.subr.bf16.mxu0 0
        %571 = vmatpush1.bf16.msra.mxu0 0
        %572 = vmatprep.subr.bf16.mxu0 0
        %573 = vmatpush1.bf16.msra.mxu0 0
        %574 = vmatprep.subr.bf16.mxu0 0
        %575 = vmatpush1.bf16.msra.mxu0 0
        %576 = vmatprep.subr.bf16.mxu0 0
        %577 = vmatpush1.bf16.msra.mxu0 0
        %578 = vmatprep.subr.bf16.mxu0 0
        %579 = vmatpush1.bf16.msra.mxu0 0
        %580 = vmatprep.subr.bf16.mxu0 0
        %581 = vmatpush1.bf16.msra.mxu0 0
        %582 = vmatprep.subr.bf16.mxu0 0
        %583 = vmatpush1.bf16.msra.mxu0 0
        %584 = vmatprep.subr.bf16.mxu0 0
        %585 = vmatpush1.bf16.msra.mxu0 0
        %586 = vmatprep.subr.bf16.mxu0 0
        %587 = vmatpush1.bf16.msra.mxu0 0
        %588 = vmatprep.subr.bf16.mxu0 0
        %589 = vmatpush1.bf16.msra.mxu0 0
        %590 = vmatprep.subr.bf16.mxu0 0
        %591 = vmatpush1.bf16.msra.mxu0 0
        %592 = vmatprep.subr.bf16.mxu0 0
        %593 = vmatpush1.bf16.msra.mxu0 0
        %594 = vmatprep.mubr.bf16.mxu0 0
        %595 = vmatmul.mubr.bf16.gmra.mrb[0].mxu0 %v557
        %v596 = vpop.f32.mrb[0].mxu0
        %v597 = vadd.f32 0.0, %v596
        %v598 = vpop.f32.mrb[0].mxu0
        %v599 = vpop.f32.mrb[0].mxu0
        %v600 = vadd.f32 0.0, %v599
        %v601 = vpop.f32.mrb[0].mxu0
        %602 = vmatprep.mubr.bf16.mxu0 0
        %603 = vmatmul.mubr.bf16.gmra.mrb[0].mxu0 %v560
        %v604 = vpop.f32.mrb[0].mxu0
        %v605 = vadd.f32 0.0, %v604
        %v606 = vpop.f32.mrb[0].mxu0
        %v607 = vpop.f32.mrb[0].mxu0
        %v608 = vadd.f32 0.0, %v607
        %v609 = vpop.f32.mrb[0].mxu0
        %610 = vdwg.mxu0
        %v611 = vadd.f32 %v518, %v597
        %v612 = vadd.f32 %v521, %v600
        %v613 = vadd.f32 %v526, %v605
        %v614 = vadd.f32 %v529, %v608
        %v615 = vld [vmem:[%s3] sm:$0xff]
        %v616 = vld [vmem:[%s3 + $0x8] sm:$0xff]
        %v617 = vld [vmem:[%s3 + $0x10] sm:$0xff]
        %v618 = vld [vmem:[%s3 + $0x18] sm:$0xff]
        %620 = vset.pattern.permute.xlu0 0
        %621 = vperm.xlu0 %620, %v615
        %v622 = vpop.permute.xlu0 %621
        %625 = vset.pattern.permute.xlu0 0
        %626 = vperm.xlu0 %625, %v616
        %v627 = vpop.permute.xlu0 %626
        %630 = vset.pattern.permute.xlu0 0
        %631 = vperm.xlu0 %630, %v617
        %v632 = vpop.permute.xlu0 %631
        %635 = vset.pattern.permute.xlu0 0
        %636 = vperm.xlu0 %635, %v618
        %v637 = vpop.permute.xlu0 %636
        %v639 = vadd.f32 %v611, %v622
        %v640 = vadd.f32 %v612, %v627
        %v641 = vadd.f32 %v613, %v632
        %v642 = vadd.f32 %v614, %v637
        %v643 = vmax.f32 %v639, 0.0
        %v644 = vmax.f32 %v640, 0.0
        %v645 = vmax.f32 %v641, 0.0
        %v646 = vmax.f32 %v642, 0.0
        %v647 = vld [vmem:[%s4] sm:$0xff]
        %v648 = vld [vmem:[%s4 + $0x8] sm:$0xff]
        %v649 = vld [vmem:[%s4 + $0x10] sm:$0xff]
        %v650 = vld [vmem:[%s4 + $0x18] sm:$0xff]
        %652 = vset.pattern.permute.xlu0 0
        %653 = vperm.xlu0 %652, %v647
        %v654 = vpop.permute.xlu0 %653
        %657 = vset.pattern.permute.xlu0 0
        %658 = vperm.xlu0 %657, %v648
        %v659 = vpop.permute.xlu0 %658
        %662 = vset.pattern.permute.xlu0 0
        %663 = vperm.xlu0 %662, %v649
        %v664 = vpop.permute.xlu0 %663
        %667 = vset.pattern.permute.xlu0 0
        %668 = vperm.xlu0 %667, %v650
        %v669 = vpop.permute.xlu0 %668
        %v671 = vmul.f32 %v643, %v654
        %v672 = vmul.f32 %v644, %v659
        %v673 = vmul.f32 %v645, %v664
        %v674 = vmul.f32 %v646, %v669
        %675 = vset.pattern.permute.xlu0 1
        %676 = vperm.xlu0 %675, %v647
        %v677 = vpop.permute.xlu0 %676
        %679 = vset.pattern.permute.xlu0 1
        %680 = vperm.xlu0 %679, %v648
        %v681 = vpop.permute.xlu0 %680
        %683 = vset.pattern.permute.xlu0 1
        %684 = vperm.xlu0 %683, %v649
        %v685 = vpop.permute.xlu0 %684
        %687 = vset.pattern.permute.xlu0 1
        %688 = vperm.xlu0 %687, %v650
        %v689 = vpop.permute.xlu0 %688
        %v691 = vadd.f32 %v671, %v677
        %v692 = vadd.f32 %v672, %v681
        %v693 = vadd.f32 %v673, %v685
        %v694 = vadd.f32 %v674, %v689
        %695 = vst [vmem:[%s366] sm:$0xff] %v691
        %696 = vst [vmem:[%s366 + $0x8] sm:$0xff] %v692
        %697 = vst [vmem:[%s366 + $0x10] sm:$0xff] %v693
        %698 = vst [vmem:[%s366 + $0x18] sm:$0xff] %v694
        %p699 = scmp.lt.s32.totalorder %s20, 1
        %s700 = scalar_select %p699, %s20, 1
        %p701 = scmp.lt.s32.totalorder %s21, 0
        %s702 = scalar_select %p701, %s21, 0
        %s703 = smul.addr %s700, 4
        %s704 = sadd.s32 %s702, %s703
        %s705 = smul.addr %s704, 8
        %s706 = scalar_lea.vmem %s5, %s705
        // Predicated region
        $region123: #{tdnn_layer_forward.3} parent=113 // pred_check
          %p707 = pneg %p169
        $region124: #{tdnn_layer_forward.3} parent=113 // pred_check_branch
          %709 = sbr.rel (%p707) target = $region126
        $region125: #{tdnn_layer_forward.3} parent=113 // pred_region
          _
        $region126: #{tdnn_layer_forward.3} parent=113 // pred_fallthru
          _
      $region114: #{tdnn_layer_forward.3} parent=5 // pred_fallthru
        _
      %p710 = scmp.le.s32.totalorder 2, %s11
      // Predicated region
      $region127: #{tdnn_layer_forward.3} parent=5 // pred_check
        %p711 = pneg %p710
      $region128: #{tdnn_layer_forward.3} parent=5 // pred_check_branch
        %713 = sbr.rel (%p711) target = $region130
      $region129: #{tdnn_layer_forward.3} parent=5 // pred_region
        %s714 = ssub.s32 %s11, 2
        // Predicated region
        $region131: #{tdnn_layer_forward.3} parent=129 // pred_check
          %p715 = pneg %p175
        $region132: #{tdnn_layer_forward.3} parent=129 // pred_check_branch
          %717 = sbr.rel (%p715) target = $region134
        $region133: #{tdnn_layer_forward.3} parent=129 // pred_region
          %p718 = scmp.lt.s32.totalorder %s22, 1
          %s719 = scalar_select %p718, %s22, 1
          %p720 = scmp.lt.s32.totalorder %s23, 0
          %s721 = scalar_select %p720, %s23, 0
          %s722 = smul.addr %s719, 4
          %s723 = sadd.s32 %s721, %s722
          %s724 = smul.addr %s723, 8
          %s725 = scalar_lea.vmem %s5, %s724
        $region134: #{tdnn_layer_forward.3} parent=129 // pred_fallthru
          _
      $region130: #{tdnn_layer_forward.3} parent=5 // pred_fallthru
        _
    $region6: #{tdnn_layer_forward.3} parent=1 // loop_footer
      %s15 = sadd.s32 1, %s11
    $region7: #{tdnn_layer_forward.3} parent=1 // loop_footer_branch
      %10 = sbr.rel target = $region3
    $region8: #{tdnn_layer_forward.3} parent=1 // loop_exit
      _

</llo_original>
